<compile_context>
chip_gen: v7x
topology: tpu7x:2x2x1
jax: 0.10.0
libtpu: 0.0.40
codegen_flags: <defaults>
</compile_context>

<pallas_src>
import functools

import jax
import jax.numpy as jnp
from jax import lax
from jax.experimental import pallas as pl
from jax.experimental.pallas import tpu as pltpu

# ----------------------------- config (small, synthetic) ---------------------
HIDDEN = 64
NUM_HEADS = 4
NUM_KV_HEADS = 2
HEAD_DIM = HIDDEN // NUM_HEADS          # 16
INTERMEDIATE = 128
SEQ = 8
RMS_EPS = 1e-6
ROPE_THETA = 10000.0
SCALING = HEAD_DIM ** -0.5
Q_SIZE = NUM_HEADS * HEAD_DIM
KV_SIZE = NUM_KV_HEADS * HEAD_DIM
GROUP = NUM_HEADS // NUM_KV_HEADS
DTYPE = jnp.float32

HIGHEST = jax.lax.Precision.HIGHEST     # used only by the pure-JAX reference


# ----------------------------- fused decoder-layer kernel --------------------
def _dot_t(x, w):
    """x @ w.T with torch (OUT, IN) weight layout.

    The transposed contraction is expressed via dot_general dimension numbers,
    so the MXU consumes the weight in place (no materialized transpose)."""
    return lax.dot_general(x, w, (((1,), (1,)), ((), ())),
                           preferred_element_type=jnp.float32)


def _decoder_layer_kernel(x_ref, r_ref, cos_ref, sin_ref,
                          ln1_ref, ln2_ref, wqkv_ref, wo_ref, wgu_ref, wd_ref,
                          out_ref, res_ref, *,
                          eps, num_heads, num_kv_heads, head_dim, inter, scale):
    T = x_ref.shape[0]
    q_size = num_heads * head_dim
    kv_size = num_kv_heads * head_dim
    group = num_heads // num_kv_heads
    half = head_dim // 2

    def rmsnorm(s, w):
        var = jnp.mean(s * s, axis=-1, keepdims=True)
        return (s * lax.rsqrt(var + eps)) * w          # w broadcast (1, H)

    cos = cos_ref[...]                                  # (T, head_dim)
    sin = sin_ref[...]

    def rope(xh):                                       # (T, head_dim), neox style
        x1 = xh[:, :half]
        x2 = xh[:, half:]
        rot = jnp.concatenate([-x2, x1], axis=-1)
        return xh * cos + rot * sin

    # ---- input_layernorm: fused residual add + RMSNorm (residual kept in VMEM)
    s1 = x_ref[...] + r_ref[...]                        # (T, H)
    h = rmsnorm(s1, ln1_ref[...])

    # ---- QKV projection (single matmul, torch (OUT, IN) weight) -------------
    qkv = _dot_t(h, wqkv_ref[...])                      # (T, q_size + 2*kv_size)
    q = qkv[:, :q_size]
    k = qkv[:, q_size:q_size + kv_size]
    v = qkv[:, q_size + kv_size:]

    # RoPE applied once per KV head; K/V stay packed in VMEM, reused per group.
    k_heads = [rope(k[:, j * head_dim:(j + 1) * head_dim])
               for j in range(num_kv_heads)]
    v_heads = [v[:, j * head_dim:(j + 1) * head_dim]
               for j in range(num_kv_heads)]

    # Causal mask (prefill positions 0..T-1); diagonal always kept -> no NaN.
    qi = lax.broadcasted_iota(jnp.int32, (T, T), 0)
    ki = lax.broadcasted_iota(jnp.int32, (T, T), 1)
    causal = ki <= qi

    # ---- attention: all heads in this one kernel invocation -----------------
    outs = []
    for hh in range(num_heads):
        qh = rope(q[:, hh * head_dim:(hh + 1) * head_dim]) * scale
        kh = k_heads[hh // group]
        vh = v_heads[hh // group]
        s = lax.dot_general(qh, kh, (((1,), (1,)), ((), ())),
                            preferred_element_type=jnp.float32)   # (T, T)
        s = jnp.where(causal, s, -jnp.inf)
        m = jnp.max(s, axis=-1, keepdims=True)
        p = jnp.exp(s - m)
        denom = jnp.sum(p, axis=-1, keepdims=True)
        p = p * pl.reciprocal(denom, approx=True)
        outs.append(jnp.dot(p, vh, preferred_element_type=jnp.float32))
    attn = jnp.concatenate(outs, axis=-1)               # (T, q_size), lane-dense

    attn_out = _dot_t(attn, wo_ref[...])                # (T, H)

    # ---- post_attention_layernorm (fused add + RMSNorm) ---------------------
    s2 = attn_out + s1
    res_ref[...] = s2.astype(res_ref.dtype)
    h2 = rmsnorm(s2, ln2_ref[...])

    # ---- MLP: gate_up -> SiLU*mul -> down, fused -----------------------------
    gu = _dot_t(h2, wgu_ref[...])                       # (T, 2*inter)
    g = gu[:, :inter]
    u = gu[:, inter:]
    act = (g * lax.logistic(g)) * u
    out_ref[...] = _dot_t(act, wd_ref[...]).astype(out_ref.dtype)


# ----------------------------- glue: decoder layer ---------------------------
def rope_cos_sin(positions, head_dim, theta):
    inv_freq = 1.0 / (theta ** (jnp.arange(0, head_dim, 2, dtype=jnp.float32)
                                / head_dim))
    freqs = positions.astype(jnp.float32)[:, None] * inv_freq[None, :]  # (T, D/2)
    emb = jnp.concatenate([freqs, freqs], axis=-1)                      # (T, D)
    return jnp.cos(emb).astype(DTYPE), jnp.sin(emb).astype(DTYPE)


def llama_decoder_layer(positions, hidden_states, residual, params):
    T, H = hidden_states.shape
    if residual is None:
        # residual := hidden, hidden := norm(hidden)  (zeros-add is equivalent)
        residual = jnp.zeros_like(hidden_states)
    cos, sin = rope_cos_sin(positions, HEAD_DIM, ROPE_THETA)

    kernel = functools.partial(
        _decoder_layer_kernel, eps=RMS_EPS, num_heads=NUM_HEADS,
        num_kv_heads=NUM_KV_HEADS, head_dim=HEAD_DIM, inter=INTERMEDIATE,
        scale=SCALING)

    out, res = pl.pallas_call(
        kernel,
        out_shape=(jax.ShapeDtypeStruct((T, H), hidden_states.dtype),
                   jax.ShapeDtypeStruct((T, H), hidden_states.dtype)),
        compiler_params=pltpu.CompilerParams(vmem_limit_bytes=64 * 1024 * 1024),
    )(hidden_states, residual, cos, sin,
      params["ln1_w"].reshape(1, H), params["ln2_w"].reshape(1, H),
      params["w_qkv"], params["w_o"], params["w_gate_up"], params["w_down"])
    return out, res


# ----------------------------- pure-JAX reference ----------------------------
def reference_decoder_layer(positions, hidden_states, residual, params):
    def rmsnorm(x, w):
        var = jnp.mean(x * x, axis=-1, keepdims=True)
        return x * jax.lax.rsqrt(var + RMS_EPS) * w

    T, _ = hidden_states.shape
    if residual is None:
        residual = hidden_states
        h = rmsnorm(hidden_states, params["ln1_w"])
    else:
        s = hidden_states + residual
        residual = s
        h = rmsnorm(s, params["ln1_w"])

    qkv = h @ params["w_qkv"].T
    q = qkv[:, :Q_SIZE].reshape(T, NUM_HEADS, HEAD_DIM)
    k = qkv[:, Q_SIZE:Q_SIZE + KV_SIZE].reshape(T, NUM_KV_HEADS, HEAD_DIM)
    v = qkv[:, Q_SIZE + KV_SIZE:].reshape(T, NUM_KV_HEADS, HEAD_DIM)

    cos, sin = rope_cos_sin(positions, HEAD_DIM, ROPE_THETA)

    def rope(x):
        half = HEAD_DIM // 2
        x1, x2 = x[..., :half], x[..., half:]
        rot = jnp.concatenate([-x2, x1], axis=-1)
        return x * cos[:, None, :] + rot * sin[:, None, :]

    q, k = rope(q), rope(k)
    k_rep = jnp.repeat(k, GROUP, axis=1)
    v_rep = jnp.repeat(v, GROUP, axis=1)
    s = jnp.einsum("qhd,khd->hqk", q, k_rep, precision=HIGHEST) * SCALING
    mask = jnp.tril(jnp.ones((T, T), dtype=bool))
    s = jnp.where(mask[None], s, -jnp.inf)
    p = jax.nn.softmax(s, axis=-1)
    o = jnp.einsum("hqk,khd->qhd", p, v_rep, precision=HIGHEST).reshape(T, Q_SIZE)
    attn_out = o @ params["w_o"].T

    s2 = attn_out + residual
    residual = s2
    h = rmsnorm(s2, params["ln2_w"])
    gu = h @ params["w_gate_up"].T
    act = jax.nn.silu(gu[:, :INTERMEDIATE]) * gu[:, INTERMEDIATE:]
    out = act @ params["w_down"].T
    return out, residual


# ----------------------------- main -------------------------------------------
def make_params(key):
    ks = jax.random.split(key, 6)
    scale = 0.05
    return {
        "ln1_w": 1.0 + 0.01 * jax.random.normal(ks[0], (HIDDEN,), DTYPE),
        "ln2_w": 1.0 + 0.01 * jax.random.normal(ks[1], (HIDDEN,), DTYPE),
        "w_qkv": scale * jax.random.normal(ks[2], (Q_SIZE + 2 * KV_SIZE, HIDDEN), DTYPE),
        "w_o": scale * jax.random.normal(ks[3], (HIDDEN, Q_SIZE), DTYPE),
        "w_gate_up": scale * jax.random.normal(ks[4], (2 * INTERMEDIATE, HIDDEN), DTYPE),
        "w_down": scale * jax.random.normal(ks[5], (HIDDEN, INTERMEDIATE), DTYPE),
    }


if __name__ == "__main__":
    key = jax.random.PRNGKey(0)
    kp, kx, kr = jax.random.split(key, 3)
    params = make_params(kp)
    hidden = jax.random.normal(kx, (SEQ, HIDDEN), DTYPE)
    prev_residual = jax.random.normal(kr, (SEQ, HIDDEN), DTYPE)
    positions = jnp.arange(SEQ, dtype=jnp.int32)

    # residual=None path (first layer)
    out1, res1 = llama_decoder_layer(positions, hidden, None, params)
    # residual-provided path (subsequent layers)
    out2, res2 = llama_decoder_layer(positions, hidden, prev_residual, params)
    jax.block_until_ready((out1, res1, out2, res2))

    # correctness vs pure-JAX reference
    ref_out1, ref_res1 = reference_decoder_layer(positions, hidden, None, params)
    ref_out2, ref_res2 = reference_decoder_layer(positions, hidden, prev_residual, params)

    ok = True
    for a, b in [(out1, ref_out1), (res1, ref_res1), (out2, ref_out2), (res2, ref_res2)]:
        ok &= bool(jnp.all(jnp.isfinite(a)))
        ok &= bool(jnp.max(jnp.abs(a - b)) < 1e-2)
    if not ok:
        raise SystemExit("mismatch vs reference")
    print("KERNEL_OK")
</pallas_src>

<mosaic_0001>
module attributes {stable_mosaic.version = 11 : i64} {
  func.func @_decoder_layer_kernel(%arg0: memref<8x64xf32, #tpu.memory_space<vmem>>, %arg1: memref<8x64xf32, #tpu.memory_space<vmem>>, %arg2: memref<8x16xf32, #tpu.memory_space<vmem>>, %arg3: memref<8x16xf32, #tpu.memory_space<vmem>>, %arg4: memref<1x64xf32, #tpu.memory_space<vmem>>, %arg5: memref<1x64xf32, #tpu.memory_space<vmem>>, %arg6: memref<128x64xf32, #tpu.memory_space<vmem>>, %arg7: memref<64x64xf32, #tpu.memory_space<vmem>>, %arg8: memref<256x64xf32, #tpu.memory_space<vmem>>, %arg9: memref<64x128xf32, #tpu.memory_space<vmem>>, %arg10: memref<8x64xf32, #tpu.memory_space<vmem>>, %arg11: memref<8x64xf32, #tpu.memory_space<vmem>>) attributes {dimension_semantics = [], scalar_prefetch = 0 : i64, scratch_operands = 0 : i64, tpu.core_type = #tpu.core_type<tc>} {
    %c0 = arith.constant 0 : index
    %c0_0 = arith.constant 0 : index
    %0 = vector.load %arg2[%c0, %c0_0] : memref<8x16xf32, #tpu.memory_space<vmem>>, vector<8x16xf32>
    %c0_1 = arith.constant 0 : index
    %c0_2 = arith.constant 0 : index
    %1 = vector.load %arg3[%c0_1, %c0_2] : memref<8x16xf32, #tpu.memory_space<vmem>>, vector<8x16xf32>
    %c0_3 = arith.constant 0 : index
    %c0_4 = arith.constant 0 : index
    %2 = vector.load %arg0[%c0_3, %c0_4] : memref<8x64xf32, #tpu.memory_space<vmem>>, vector<8x64xf32>
    %c0_5 = arith.constant 0 : index
    %c0_6 = arith.constant 0 : index
    %3 = vector.load %arg1[%c0_5, %c0_6] : memref<8x64xf32, #tpu.memory_space<vmem>>, vector<8x64xf32>
    %4 = arith.addf %2, %3 : vector<8x64xf32>
    %c0_7 = arith.constant 0 : index
    %c0_8 = arith.constant 0 : index
    %5 = vector.load %arg4[%c0_7, %c0_8] : memref<1x64xf32, #tpu.memory_space<vmem>>, vector<1x64xf32>
    %6 = arith.mulf %4, %4 : vector<8x64xf32>
    %cst = arith.constant dense<0.000000e+00> : vector<8xf32>
    %7 = vector.multi_reduction <add>, %6, %cst [1] : vector<8x64xf32> to vector<8xf32>
    %8 = vector.shape_cast %7 : vector<8xf32> to vector<8x1xf32>
    %cst_9 = arith.constant 6.400000e+01 : f32
    %9 = vector.broadcast %cst_9 : f32 to vector<8x1xf32>
    %10 = arith.divf %8, %9 : vector<8x1xf32>
    %cst_10 = arith.constant 9.99999997E-7 : f32
    %11 = vector.broadcast %cst_10 : f32 to vector<8x1xf32>
    %12 = arith.addf %10, %11 : vector<8x1xf32>
    %13 = math.rsqrt %12 : vector<8x1xf32>
    %14 = vector.broadcast %13 : vector<8x1xf32> to vector<8x64xf32>
    %15 = arith.mulf %4, %14 : vector<8x64xf32>
    %16 = vector.broadcast %5 : vector<1x64xf32> to vector<8x64xf32>
    %17 = arith.mulf %15, %16 : vector<8x64xf32>
    %c0_11 = arith.constant 0 : index
    %c0_12 = arith.constant 0 : index
    %18 = vector.load %arg6[%c0_11, %c0_12] : memref<128x64xf32, #tpu.memory_space<vmem>>, vector<128x64xf32>
    %cst_13 = arith.constant dense<0.000000e+00> : vector<8x128xf32>
    %19 = tpu.matmul %17, %18, %cst_13 {dimension_numbers = #tpu.dot_dimension_numbers<[1], [1], [0], [0], [0, 0, 1, 0], [], []>} : vector<8x64xf32>, vector<128x64xf32>, vector<8x128xf32> -> vector<8x128xf32>
    %20 = vector.extract_strided_slice %19 {offsets = [0, 0], sizes = [8, 64], strides = [1, 1]} : vector<8x128xf32> to vector<8x64xf32>
    %21 = vector.extract_strided_slice %19 {offsets = [0, 64], sizes = [8, 32], strides = [1, 1]} : vector<8x128xf32> to vector<8x32xf32>
    %22 = vector.extract_strided_slice %19 {offsets = [0, 96], sizes = [8, 32], strides = [1, 1]} : vector<8x128xf32> to vector<8x32xf32>
    %23 = vector.extract_strided_slice %21 {offsets = [0, 0], sizes = [8, 16], strides = [1, 1]} : vector<8x32xf32> to vector<8x16xf32>
    %24 = vector.extract_strided_slice %23 {offsets = [0, 0], sizes = [8, 8], strides = [1, 1]} : vector<8x16xf32> to vector<8x8xf32>
    %25 = vector.extract_strided_slice %23 {offsets = [0, 8], sizes = [8, 8], strides = [1, 1]} : vector<8x16xf32> to vector<8x8xf32>
    %cst_14 = arith.constant 0.000000e+00 : f32
    %26 = vector.broadcast %cst_14 : f32 to vector<8x8xf32>
    %27 = arith.subf %26, %25 : vector<8x8xf32>
    %28 = tpu.concatenate %27, %24 in 1 : vector<8x8xf32>, vector<8x8xf32> -> vector<8x16xf32>
    %29 = arith.mulf %23, %0 : vector<8x16xf32>
    %30 = arith.mulf %28, %1 : vector<8x16xf32>
    %31 = arith.addf %29, %30 : vector<8x16xf32>
    %32 = vector.extract_strided_slice %21 {offsets = [0, 16], sizes = [8, 16], strides = [1, 1]} : vector<8x32xf32> to vector<8x16xf32>
    %33 = vector.extract_strided_slice %32 {offsets = [0, 0], sizes = [8, 8], strides = [1, 1]} : vector<8x16xf32> to vector<8x8xf32>
    %34 = vector.extract_strided_slice %32 {offsets = [0, 8], sizes = [8, 8], strides = [1, 1]} : vector<8x16xf32> to vector<8x8xf32>
    %cst_15 = arith.constant 0.000000e+00 : f32
    %35 = vector.broadcast %cst_15 : f32 to vector<8x8xf32>
    %36 = arith.subf %35, %34 : vector<8x8xf32>
    %37 = tpu.concatenate %36, %33 in 1 : vector<8x8xf32>, vector<8x8xf32> -> vector<8x16xf32>
    %38 = arith.mulf %32, %0 : vector<8x16xf32>
    %39 = arith.mulf %37, %1 : vector<8x16xf32>
    %40 = arith.addf %38, %39 : vector<8x16xf32>
    %41 = vector.extract_strided_slice %22 {offsets = [0, 0], sizes = [8, 16], strides = [1, 1]} : vector<8x32xf32> to vector<8x16xf32>
    %42 = vector.extract_strided_slice %22 {offsets = [0, 16], sizes = [8, 16], strides = [1, 1]} : vector<8x32xf32> to vector<8x16xf32>
    %43 = tpu.iota {dimensions = array<i32: 0>} : vector<8x8xi32>
    %44 = tpu.iota {dimensions = array<i32: 1>} : vector<8x8xi32>
    %45 = arith.cmpi sle, %44, %43 : vector<8x8xi32>
    %46 = vector.extract_strided_slice %20 {offsets = [0, 0], sizes = [8, 16], strides = [1, 1]} : vector<8x64xf32> to vector<8x16xf32>
    %47 = vector.extract_strided_slice %46 {offsets = [0, 0], sizes = [8, 8], strides = [1, 1]} : vector<8x16xf32> to vector<8x8xf32>
    %48 = vector.extract_strided_slice %46 {offsets = [0, 8], sizes = [8, 8], strides = [1, 1]} : vector<8x16xf32> to vector<8x8xf32>
    %cst_16 = arith.constant 0.000000e+00 : f32
    %49 = vector.broadcast %cst_16 : f32 to vector<8x8xf32>
    %50 = arith.subf %49, %48 : vector<8x8xf32>
    %51 = tpu.concatenate %50, %47 in 1 : vector<8x8xf32>, vector<8x8xf32> -> vector<8x16xf32>
    %52 = arith.mulf %46, %0 : vector<8x16xf32>
    %53 = arith.mulf %51, %1 : vector<8x16xf32>
    %54 = arith.addf %52, %53 : vector<8x16xf32>
    %cst_17 = arith.constant 2.500000e-01 : f32
    %55 = vector.broadcast %cst_17 : f32 to vector<8x16xf32>
    %56 = arith.mulf %54, %55 : vector<8x16xf32>
    %cst_18 = arith.constant dense<0.000000e+00> : vector<8x8xf32>
    %57 = tpu.matmul %56, %31, %cst_18 {dimension_numbers = #tpu.dot_dimension_numbers<[1], [1], [0], [0], [0, 0, 1, 0], [], []>} : vector<8x16xf32>, vector<8x16xf32>, vector<8x8xf32> -> vector<8x8xf32>
    %cst_19 = arith.constant 0xFF800000 : f32
    %58 = vector.broadcast %cst_19 : f32 to vector<8x8xf32>
    %59 = arith.select %45, %57, %58 : vector<8x8xi1>, vector<8x8xf32>
    %cst_20 = arith.constant dense<0xFF800000> : vector<8xf32>
    %60 = vector.multi_reduction <maximumf>, %59, %cst_20 [1] : vector<8x8xf32> to vector<8xf32>
    %61 = vector.shape_cast %60 : vector<8xf32> to vector<8x1xf32>
    %62 = vector.broadcast %61 : vector<8x1xf32> to vector<8x8xf32>
    %63 = arith.subf %59, %62 : vector<8x8xf32>
    %64 = math.exp %63 : vector<8x8xf32>
    %cst_21 = arith.constant dense<0.000000e+00> : vector<8xf32>
    %65 = vector.multi_reduction <add>, %64, %cst_21 [1] : vector<8x8xf32> to vector<8xf32>
    %66 = vector.shape_cast %65 : vector<8xf32> to vector<8x1xf32>
    %67 = tpu.reciprocal %66 {approx = true} : vector<8x1xf32> -> vector<8x1xf32>
    %68 = vector.broadcast %67 : vector<8x1xf32> to vector<8x8xf32>
    %69 = arith.mulf %64, %68 : vector<8x8xf32>
    %cst_22 = arith.constant dense<0.000000e+00> : vector<8x16xf32>
    %70 = tpu.matmul %69, %41, %cst_22 {dimension_numbers = #tpu.dot_dimension_numbers<[1], [0], [0], [1], [0, 0, 1, 1], [], []>} : vector<8x8xf32>, vector<8x16xf32>, vector<8x16xf32> -> vector<8x16xf32>
    %71 = vector.extract_strided_slice %20 {offsets = [0, 16], sizes = [8, 16], strides = [1, 1]} : vector<8x64xf32> to vector<8x16xf32>
    %72 = vector.extract_strided_slice %71 {offsets = [0, 0], sizes = [8, 8], strides = [1, 1]} : vector<8x16xf32> to vector<8x8xf32>
    %73 = vector.extract_strided_slice %71 {offsets = [0, 8], sizes = [8, 8], strides = [1, 1]} : vector<8x16xf32> to vector<8x8xf32>
    %cst_23 = arith.constant 0.000000e+00 : f32
    %74 = vector.broadcast %cst_23 : f32 to vector<8x8xf32>
    %75 = arith.subf %74, %73 : vector<8x8xf32>
    %76 = tpu.concatenate %75, %72 in 1 : vector<8x8xf32>, vector<8x8xf32> -> vector<8x16xf32>
    %77 = arith.mulf %71, %0 : vector<8x16xf32>
    %78 = arith.mulf %76, %1 : vector<8x16xf32>
    %79 = arith.addf %77, %78 : vector<8x16xf32>
    %cst_24 = arith.constant 2.500000e-01 : f32
    %80 = vector.broadcast %cst_24 : f32 to vector<8x16xf32>
    %81 = arith.mulf %79, %80 : vector<8x16xf32>
    %cst_25 = arith.constant dense<0.000000e+00> : vector<8x8xf32>
    %82 = tpu.matmul %81, %31, %cst_25 {dimension_numbers = #tpu.dot_dimension_numbers<[1], [1], [0], [0], [0, 0, 1, 0], [], []>} : vector<8x16xf32>, vector<8x16xf32>, vector<8x8xf32> -> vector<8x8xf32>
    %cst_26 = arith.constant 0xFF800000 : f32
    %83 = vector.broadcast %cst_26 : f32 to vector<8x8xf32>
    %84 = arith.select %45, %82, %83 : vector<8x8xi1>, vector<8x8xf32>
    %cst_27 = arith.constant dense<0xFF800000> : vector<8xf32>
    %85 = vector.multi_reduction <maximumf>, %84, %cst_27 [1] : vector<8x8xf32> to vector<8xf32>
    %86 = vector.shape_cast %85 : vector<8xf32> to vector<8x1xf32>
    %87 = vector.broadcast %86 : vector<8x1xf32> to vector<8x8xf32>
    %88 = arith.subf %84, %87 : vector<8x8xf32>
    %89 = math.exp %88 : vector<8x8xf32>
    %cst_28 = arith.constant dense<0.000000e+00> : vector<8xf32>
    %90 = vector.multi_reduction <add>, %89, %cst_28 [1] : vector<8x8xf32> to vector<8xf32>
    %91 = vector.shape_cast %90 : vector<8xf32> to vector<8x1xf32>
    %92 = tpu.reciprocal %91 {approx = true} : vector<8x1xf32> -> vector<8x1xf32>
    %93 = vector.broadcast %92 : vector<8x1xf32> to vector<8x8xf32>
    %94 = arith.mulf %89, %93 : vector<8x8xf32>
    %cst_29 = arith.constant dense<0.000000e+00> : vector<8x16xf32>
    %95 = tpu.matmul %94, %41, %cst_29 {dimension_numbers = #tpu.dot_dimension_numbers<[1], [0], [0], [1], [0, 0, 1, 1], [], []>} : vector<8x8xf32>, vector<8x16xf32>, vector<8x16xf32> -> vector<8x16xf32>
    %96 = vector.extract_strided_slice %20 {offsets = [0, 32], sizes = [8, 16], strides = [1, 1]} : vector<8x64xf32> to vector<8x16xf32>
    %97 = vector.extract_strided_slice %96 {offsets = [0, 0], sizes = [8, 8], strides = [1, 1]} : vector<8x16xf32> to vector<8x8xf32>
    %98 = vector.extract_strided_slice %96 {offsets = [0, 8], sizes = [8, 8], strides = [1, 1]} : vector<8x16xf32> to vector<8x8xf32>
    %cst_30 = arith.constant 0.000000e+00 : f32
    %99 = vector.broadcast %cst_30 : f32 to vector<8x8xf32>
    %100 = arith.subf %99, %98 : vector<8x8xf32>
    %101 = tpu.concatenate %100, %97 in 1 : vector<8x8xf32>, vector<8x8xf32> -> vector<8x16xf32>
    %102 = arith.mulf %96, %0 : vector<8x16xf32>
    %103 = arith.mulf %101, %1 : vector<8x16xf32>
    %104 = arith.addf %102, %103 : vector<8x16xf32>
    %cst_31 = arith.constant 2.500000e-01 : f32
    %105 = vector.broadcast %cst_31 : f32 to vector<8x16xf32>
    %106 = arith.mulf %104, %105 : vector<8x16xf32>
    %cst_32 = arith.constant dense<0.000000e+00> : vector<8x8xf32>
    %107 = tpu.matmul %106, %40, %cst_32 {dimension_numbers = #tpu.dot_dimension_numbers<[1], [1], [0], [0], [0, 0, 1, 0], [], []>} : vector<8x16xf32>, vector<8x16xf32>, vector<8x8xf32> -> vector<8x8xf32>
    %cst_33 = arith.constant 0xFF800000 : f32
    %108 = vector.broadcast %cst_33 : f32 to vector<8x8xf32>
    %109 = arith.select %45, %107, %108 : vector<8x8xi1>, vector<8x8xf32>
    %cst_34 = arith.constant dense<0xFF800000> : vector<8xf32>
    %110 = vector.multi_reduction <maximumf>, %109, %cst_34 [1] : vector<8x8xf32> to vector<8xf32>
    %111 = vector.shape_cast %110 : vector<8xf32> to vector<8x1xf32>
    %112 = vector.broadcast %111 : vector<8x1xf32> to vector<8x8xf32>
    %113 = arith.subf %109, %112 : vector<8x8xf32>
    %114 = math.exp %113 : vector<8x8xf32>
    %cst_35 = arith.constant dense<0.000000e+00> : vector<8xf32>
    %115 = vector.multi_reduction <add>, %114, %cst_35 [1] : vector<8x8xf32> to vector<8xf32>
    %116 = vector.shape_cast %115 : vector<8xf32> to vector<8x1xf32>
    %117 = tpu.reciprocal %116 {approx = true} : vector<8x1xf32> -> vector<8x1xf32>
    %118 = vector.broadcast %117 : vector<8x1xf32> to vector<8x8xf32>
    %119 = arith.mulf %114, %118 : vector<8x8xf32>
    %cst_36 = arith.constant dense<0.000000e+00> : vector<8x16xf32>
    %120 = tpu.matmul %119, %42, %cst_36 {dimension_numbers = #tpu.dot_dimension_numbers<[1], [0], [0], [1], [0, 0, 1, 1], [], []>} : vector<8x8xf32>, vector<8x16xf32>, vector<8x16xf32> -> vector<8x16xf32>
    %121 = vector.extract_strided_slice %20 {offsets = [0, 48], sizes = [8, 16], strides = [1, 1]} : vector<8x64xf32> to vector<8x16xf32>
    %122 = vector.extract_strided_slice %121 {offsets = [0, 0], sizes = [8, 8], strides = [1, 1]} : vector<8x16xf32> to vector<8x8xf32>
    %123 = vector.extract_strided_slice %121 {offsets = [0, 8], sizes = [8, 8], strides = [1, 1]} : vector<8x16xf32> to vector<8x8xf32>
    %cst_37 = arith.constant 0.000000e+00 : f32
    %124 = vector.broadcast %cst_37 : f32 to vector<8x8xf32>
    %125 = arith.subf %124, %123 : vector<8x8xf32>
    %126 = tpu.concatenate %125, %122 in 1 : vector<8x8xf32>, vector<8x8xf32> -> vector<8x16xf32>
    %127 = arith.mulf %121, %0 : vector<8x16xf32>
    %128 = arith.mulf %126, %1 : vector<8x16xf32>
    %129 = arith.addf %127, %128 : vector<8x16xf32>
    %cst_38 = arith.constant 2.500000e-01 : f32
    %130 = vector.broadcast %cst_38 : f32 to vector<8x16xf32>
    %131 = arith.mulf %129, %130 : vector<8x16xf32>
    %cst_39 = arith.constant dense<0.000000e+00> : vector<8x8xf32>
    %132 = tpu.matmul %131, %40, %cst_39 {dimension_numbers = #tpu.dot_dimension_numbers<[1], [1], [0], [0], [0, 0, 1, 0], [], []>} : vector<8x16xf32>, vector<8x16xf32>, vector<8x8xf32> -> vector<8x8xf32>
    %cst_40 = arith.constant 0xFF800000 : f32
    %133 = vector.broadcast %cst_40 : f32 to vector<8x8xf32>
    %134 = arith.select %45, %132, %133 : vector<8x8xi1>, vector<8x8xf32>
    %cst_41 = arith.constant dense<0xFF800000> : vector<8xf32>
    %135 = vector.multi_reduction <maximumf>, %134, %cst_41 [1] : vector<8x8xf32> to vector<8xf32>
    %136 = vector.shape_cast %135 : vector<8xf32> to vector<8x1xf32>
    %137 = vector.broadcast %136 : vector<8x1xf32> to vector<8x8xf32>
    %138 = arith.subf %134, %137 : vector<8x8xf32>
    %139 = math.exp %138 : vector<8x8xf32>
    %cst_42 = arith.constant dense<0.000000e+00> : vector<8xf32>
    %140 = vector.multi_reduction <add>, %139, %cst_42 [1] : vector<8x8xf32> to vector<8xf32>
    %141 = vector.shape_cast %140 : vector<8xf32> to vector<8x1xf32>
    %142 = tpu.reciprocal %141 {approx = true} : vector<8x1xf32> -> vector<8x1xf32>
    %143 = vector.broadcast %142 : vector<8x1xf32> to vector<8x8xf32>
    %144 = arith.mulf %139, %143 : vector<8x8xf32>
    %cst_43 = arith.constant dense<0.000000e+00> : vector<8x16xf32>
    %145 = tpu.matmul %144, %42, %cst_43 {dimension_numbers = #tpu.dot_dimension_numbers<[1], [0], [0], [1], [0, 0, 1, 1], [], []>} : vector<8x8xf32>, vector<8x16xf32>, vector<8x16xf32> -> vector<8x16xf32>
    %146 = tpu.concatenate %70, %95, %120, %145 in 1 : vector<8x16xf32>, vector<8x16xf32>, vector<8x16xf32>, vector<8x16xf32> -> vector<8x64xf32>
    %c0_44 = arith.constant 0 : index
    %c0_45 = arith.constant 0 : index
    %147 = vector.load %arg7[%c0_44, %c0_45] : memref<64x64xf32, #tpu.memory_space<vmem>>, vector<64x64xf32>
    %cst_46 = arith.constant dense<0.000000e+00> : vector<8x64xf32>
    %148 = tpu.matmul %146, %147, %cst_46 {dimension_numbers = #tpu.dot_dimension_numbers<[1], [1], [0], [0], [0, 0, 1, 0], [], []>} : vector<8x64xf32>, vector<64x64xf32>, vector<8x64xf32> -> vector<8x64xf32>
    %149 = arith.addf %148, %4 : vector<8x64xf32>
    %c0_47 = arith.constant 0 : index
    %c0_48 = arith.constant 0 : index
    %150 = vector.load %arg11[%c0_47, %c0_48] : memref<8x64xf32, #tpu.memory_space<vmem>>, vector<8x64xf32>
    tpu.vector_store %arg11[%c0_47, %c0_48], %149 {strides = array<i32>} : memref<8x64xf32, #tpu.memory_space<vmem>>, vector<8x64xf32>,
    %c0_49 = arith.constant 0 : index
    %c0_50 = arith.constant 0 : index
    %151 = vector.load %arg5[%c0_49, %c0_50] : memref<1x64xf32, #tpu.memory_space<vmem>>, vector<1x64xf32>
    %152 = arith.mulf %149, %149 : vector<8x64xf32>
    %cst_51 = arith.constant dense<0.000000e+00> : vector<8xf32>
    %153 = vector.multi_reduction <add>, %152, %cst_51 [1] : vector<8x64xf32> to vector<8xf32>
    %154 = vector.shape_cast %153 : vector<8xf32> to vector<8x1xf32>
    %cst_52 = arith.constant 6.400000e+01 : f32
    %155 = vector.broadcast %cst_52 : f32 to vector<8x1xf32>
    %156 = arith.divf %154, %155 : vector<8x1xf32>
    %cst_53 = arith.constant 9.99999997E-7 : f32
    %157 = vector.broadcast %cst_53 : f32 to vector<8x1xf32>
    %158 = arith.addf %156, %157 : vector<8x1xf32>
    %159 = math.rsqrt %158 : vector<8x1xf32>
    %160 = vector.broadcast %159 : vector<8x1xf32> to vector<8x64xf32>
    %161 = arith.mulf %149, %160 : vector<8x64xf32>
    %162 = vector.broadcast %151 : vector<1x64xf32> to vector<8x64xf32>
    %163 = arith.mulf %161, %162 : vector<8x64xf32>
    %c0_54 = arith.constant 0 : index
    %c0_55 = arith.constant 0 : index
    %164 = vector.load %arg8[%c0_54, %c0_55] : memref<256x64xf32, #tpu.memory_space<vmem>>, vector<256x64xf32>
    %cst_56 = arith.constant dense<0.000000e+00> : vector<8x256xf32>
    %165 = tpu.matmul %163, %164, %cst_56 {dimension_numbers = #tpu.dot_dimension_numbers<[1], [1], [0], [0], [0, 0, 1, 0], [], []>} : vector<8x64xf32>, vector<256x64xf32>, vector<8x256xf32> -> vector<8x256xf32>
    %166 = vector.extract_strided_slice %165 {offsets = [0, 0], sizes = [8, 128], strides = [1, 1]} : vector<8x256xf32> to vector<8x128xf32>
    %167 = vector.extract_strided_slice %165 {offsets = [0, 128], sizes = [8, 128], strides = [1, 1]} : vector<8x256xf32> to vector<8x128xf32>
    %168 = arith.negf %166 : vector<8x128xf32>
    %169 = math.exp %168 : vector<8x128xf32>
    %cst_57 = arith.constant 1.000000e+00 : f32
    %170 = vector.broadcast %cst_57 : f32 to vector<8x128xf32>
    %171 = arith.addf %170, %169 : vector<8x128xf32>
    %172 = arith.divf %170, %171 : vector<8x128xf32>
    %173 = arith.mulf %166, %172 : vector<8x128xf32>
    %174 = arith.mulf %173, %167 : vector<8x128xf32>
    %c0_58 = arith.constant 0 : index
    %c0_59 = arith.constant 0 : index
    %175 = vector.load %arg9[%c0_58, %c0_59] : memref<64x128xf32, #tpu.memory_space<vmem>>, vector<64x128xf32>
    %cst_60 = arith.constant dense<0.000000e+00> : vector<8x64xf32>
    %176 = tpu.matmul %174, %175, %cst_60 {dimension_numbers = #tpu.dot_dimension_numbers<[1], [1], [0], [0], [0, 0, 1, 0], [], []>} : vector<8x128xf32>, vector<64x128xf32>, vector<8x64xf32> -> vector<8x64xf32>
    %c0_61 = arith.constant 0 : index
    %c0_62 = arith.constant 0 : index
    %177 = vector.load %arg10[%c0_61, %c0_62] : memref<8x64xf32, #tpu.memory_space<vmem>>, vector<8x64xf32>
    tpu.vector_store %arg10[%c0_61, %c0_62], %176 {strides = array<i32>} : memref<8x64xf32, #tpu.memory_space<vmem>>, vector<8x64xf32>,
    return
  }
}

</mosaic_0001>

<llo_original>
// kernel: tpu_custom_call.1
$region0: #{tpu_custom_call.1}
  #allocation0 [shape = 'u32[]', space=smem, size = 0x4, offset = 0x4, fixed_abs, tag = 'smem constant byte address 0x4 - core index']
  #allocation1 [shape = 'u32[144,128]{1,0:T(1,128)}', space=vmem, size = 0x12000, scoped, tag = 'internal scratch']
  %s0 = inlined_call_operand.hbm [shape: f32[8,64], index: 0, kind: input, shape index: {}]
  %s1 = inlined_call_operand.hbm [shape: f32[8,64], index: 1, kind: input, shape index: {}]
  %s2 = inlined_call_operand.hbm [shape: f32[8,16], index: 2, kind: input, shape index: {}]
  %s3 = inlined_call_operand.hbm [shape: f32[8,16], index: 3, kind: input, shape index: {}]
  %s4 = inlined_call_operand.hbm [shape: f32[1,64], index: 4, kind: input, shape index: {}]
  %s5 = inlined_call_operand.hbm [shape: f32[1,64], index: 5, kind: input, shape index: {}]
  %s6 = inlined_call_operand.hbm [shape: f32[128,64], index: 6, kind: input, shape index: {}]
  %s7 = inlined_call_operand.hbm [shape: f32[64,64], index: 7, kind: input, shape index: {}]
  %s8 = inlined_call_operand.hbm [shape: f32[256,64], index: 8, kind: input, shape index: {}]
  %s9 = inlined_call_operand.hbm [shape: f32[64,128], index: 9, kind: input, shape index: {}]
  %s10 = inlined_call_operand.hbm [shape: f32[8,64], index: 10, kind: output, shape index: {0}]
  %s11 = inlined_call_operand.hbm [shape: f32[8,64], index: 11, kind: output, shape index: {1}]
  %12 = xla_tuple %s10, %s11
  %s13 = sld [smem:[#allocation0]]
  $region98: #{tpu_custom_call.1} parent=0
    _
  %s15 = ssub.s32 1, %s13
  %s16 = scalar_select 0, %s15, %s13
  $region1: #{tpu_custom_call.1} parent=0
    #allocation2 [shape = 'u8[4096]{0}', space=vmem, size = 0x1000, scoped, tag = 'input window, operand 0, single buffered']
    #allocation3 [shape = 's32[1]{0}', space=sflag, size = 0x4, scoped, tag = 'scoped memory for tpu_custom_call.1']
    #allocation4 [shape = 's32[1]{0}', space=sflag, size = 0x4, scoped, tag = 'scoped memory for tpu_custom_call.1']
    #allocation5 [shape = 'u8[4096]{0}', space=vmem, size = 0x1000, scoped, tag = 'input window, operand 1, single buffered']
    #allocation6 [shape = 's32[1]{0}', space=sflag, size = 0x4, scoped, tag = 'scoped memory for tpu_custom_call.1']
    #allocation7 [shape = 'u8[4096]{0}', space=vmem, size = 0x1000, scoped, tag = 'input window, operand 2, single buffered']
    #allocation8 [shape = 'u8[4096]{0}', space=vmem, size = 0x1000, scoped, tag = 'input window, operand 3, single buffered']
    #allocation9 [shape = 's32[1]{0}', space=sflag, size = 0x4, scoped, tag = 'scoped memory for tpu_custom_call.1']
    #allocation10 [shape = 'u8[512]{0}', space=vmem, size = 0x400, scoped, tag = 'input window, operand 4, single buffered']
    #allocation11 [shape = 'u8[512]{0}', space=vmem, size = 0x400, scoped, tag = 'input window, operand 5, single buffered']
    #allocation12 [shape = 's32[1]{0}', space=sflag, size = 0x4, scoped, tag = 'scoped memory for tpu_custom_call.1']
    #allocation13 [shape = 'u8[65536]{0}', space=vmem, size = 0x10000, scoped, tag = 'input window, operand 6, single buffered']
    #allocation14 [shape = 'u8[32768]{0}', space=vmem, size = 0x8000, scoped, tag = 'input window, operand 7, single buffered']
    #allocation15 [shape = 's32[1]{0}', space=sflag, size = 0x4, scoped, tag = 'scoped memory for tpu_custom_call.1']
    #allocation16 [shape = 'u8[131072]{0}', space=vmem, size = 0x20000, scoped, tag = 'input window, operand 8, single buffered']
    #allocation17 [shape = 'u8[32768]{0}', space=vmem, size = 0x8000, scoped, tag = 'input window, operand 9, single buffered']
    #allocation18 [shape = 's32[1]{0}', space=sflag, size = 0x4, scoped, tag = 'scoped memory for tpu_custom_call.1']
    #allocation19 [shape = 'u8[4096]{0}', space=vmem, size = 0x1000, scoped, tag = 'output window, operand 0, single buffered']
    #allocation20 [shape = 'u8[4096]{0}', space=vmem, size = 0x1000, scoped, tag = 'output window, operand 1, single buffered']
    #allocation21 [shape = 's32[1]{0}', space=sflag, size = 0x4, scoped, tag = 'scoped memory for tpu_custom_call.1']
    %17 = vsyncpa [#allocation3], 0
    %18 = vsyncpa [#allocation6], 0
    %19 = vsyncpa [#allocation9], 0
    %20 = vsyncpa [#allocation12], 0
    %21 = vsyncpa [#allocation15], 0
    %22 = vsyncpa [#allocation18], 0
    %23 = vsyncpa [#allocation4], 0
    %24 = vsyncpa [#allocation21], 0
    // Predicated region
    $region2: #{tpu_custom_call.1} parent=1 // pred_check
      _
    $region3: #{tpu_custom_call.1} parent=1 // pred_check_branch
      %26 = sbr.rel (0) target = $region5
    $region4: #{tpu_custom_call.1} parent=1 // pred_region
      %s28 = ssub.s32 128, 128
      %29 = vsyncadd [#allocation3], %s28
      %s31 = sshll.u32 [#allocation2], 4
      %s32 = int_to_ptr.vmem [resolvable:$true] %s31
      %34 = dma.hbm_to_vmem [thread:$0]  %s0, 128, %s32, [#allocation3]
    $region5: #{tpu_custom_call.1} parent=1 // pred_fallthru
      _
    // Predicated region
    $region6: #{tpu_custom_call.1} parent=1 // pred_check
      _
    $region7: #{tpu_custom_call.1} parent=1 // pred_check_branch
      %36 = sbr.rel (0) target = $region9
    $region8: #{tpu_custom_call.1} parent=1 // pred_region
      %s38 = ssub.s32 128, 128
      %39 = vsyncadd [#allocation6], %s38
      %s41 = sshll.u32 [#allocation5], 4
      %s42 = int_to_ptr.vmem [resolvable:$true] %s41
      %44 = dma.hbm_to_vmem [thread:$0]  %s1, 128, %s42, [#allocation6]
    $region9: #{tpu_custom_call.1} parent=1 // pred_fallthru
      _
    // Predicated region
    $region10: #{tpu_custom_call.1} parent=1 // pred_check
      _
    $region11: #{tpu_custom_call.1} parent=1 // pred_check_branch
      %46 = sbr.rel (0) target = $region13
    $region12: #{tpu_custom_call.1} parent=1 // pred_region
      %s48 = ssub.s32 128, 128
      %49 = vsyncadd [#allocation6], %s48
      %s51 = sshll.u32 [#allocation7], 4
      %s52 = int_to_ptr.vmem [resolvable:$true] %s51
      %54 = dma.hbm_to_vmem [thread:$0]  %s2, 128, %s52, [#allocation6]
    $region13: #{tpu_custom_call.1} parent=1 // pred_fallthru
      _
    // Predicated region
    $region14: #{tpu_custom_call.1} parent=1 // pred_check
      _
    $region15: #{tpu_custom_call.1} parent=1 // pred_check_branch
      %56 = sbr.rel (0) target = $region17
    $region16: #{tpu_custom_call.1} parent=1 // pred_region
      %s58 = ssub.s32 128, 128
      %59 = vsyncadd [#allocation9], %s58
      %s61 = sshll.u32 [#allocation8], 4
      %s62 = int_to_ptr.vmem [resolvable:$true] %s61
      %64 = dma.hbm_to_vmem [thread:$0]  %s3, 128, %s62, [#allocation9]
    $region17: #{tpu_custom_call.1} parent=1 // pred_fallthru
      _
    // Predicated region
    $region18: #{tpu_custom_call.1} parent=1 // pred_check
      _
    $region19: #{tpu_custom_call.1} parent=1 // pred_check_branch
      %66 = sbr.rel (0) target = $region21
    $region20: #{tpu_custom_call.1} parent=1 // pred_region
      %s68 = ssub.s32 16, 16
      %69 = vsyncadd [#allocation9], %s68
      %s71 = sshll.u32 [#allocation10], 4
      %s72 = int_to_ptr.vmem [resolvable:$true] %s71
      %74 = dma.hbm_to_vmem [thread:$0]  %s4, 16, %s72, [#allocation9]
    $region21: #{tpu_custom_call.1} parent=1 // pred_fallthru
      _
    // Predicated region
    $region22: #{tpu_custom_call.1} parent=1 // pred_check
      _
    $region23: #{tpu_custom_call.1} parent=1 // pred_check_branch
      %76 = sbr.rel (0) target = $region25
    $region24: #{tpu_custom_call.1} parent=1 // pred_region
      %s78 = ssub.s32 16, 16
      %79 = vsyncadd [#allocation12], %s78
      %s81 = sshll.u32 [#allocation11], 4
      %s82 = int_to_ptr.vmem [resolvable:$true] %s81
      %84 = dma.hbm_to_vmem [thread:$0]  %s5, 16, %s82, [#allocation12]
    $region25: #{tpu_custom_call.1} parent=1 // pred_fallthru
      _
    // Predicated region
    $region26: #{tpu_custom_call.1} parent=1 // pred_check
      _
    $region27: #{tpu_custom_call.1} parent=1 // pred_check_branch
      %86 = sbr.rel (0) target = $region29
    $region28: #{tpu_custom_call.1} parent=1 // pred_region
      %s88 = ssub.s32 2048, 2048
      %89 = vsyncadd [#allocation12], %s88
      %s90 = sshll.u32 [#allocation13], 4
      %s91 = int_to_ptr.vmem [resolvable:$true] %s90
      %96 = dma.hbm_to_vmem [thread:$0]  %s6, 2048, %s91, [#allocation12], 128, 128, 8
    $region29: #{tpu_custom_call.1} parent=1 // pred_fallthru
      _
    // Predicated region
    $region30: #{tpu_custom_call.1} parent=1 // pred_check
      _
    $region31: #{tpu_custom_call.1} parent=1 // pred_check_branch
      %98 = sbr.rel (0) target = $region33
    $region32: #{tpu_custom_call.1} parent=1 // pred_region
      %s100 = ssub.s32 1024, 1024
      %101 = vsyncadd [#allocation15], %s100
      %s102 = sshll.u32 [#allocation14], 4
      %s103 = int_to_ptr.vmem [resolvable:$true] %s102
      %108 = dma.hbm_to_vmem [thread:$0]  %s7, 1024, %s103, [#allocation15], 128, 128, 8
    $region33: #{tpu_custom_call.1} parent=1 // pred_fallthru
      _
    // Predicated region
    $region34: #{tpu_custom_call.1} parent=1 // pred_check
      _
    $region35: #{tpu_custom_call.1} parent=1 // pred_check_branch
      %110 = sbr.rel (0) target = $region37
    $region36: #{tpu_custom_call.1} parent=1 // pred_region
      %s112 = ssub.s32 4096, 4096
      %113 = vsyncadd [#allocation15], %s112
      %s114 = sshll.u32 [#allocation16], 4
      %s115 = int_to_ptr.vmem [resolvable:$true] %s114
      %120 = dma.hbm_to_vmem [thread:$0]  %s8, 4096, %s115, [#allocation15], 128, 128, 8
    $region37: #{tpu_custom_call.1} parent=1 // pred_fallthru
      _
    // Predicated region
    $region38: #{tpu_custom_call.1} parent=1 // pred_check
      _
    $region39: #{tpu_custom_call.1} parent=1 // pred_check_branch
      %122 = sbr.rel (0) target = $region41
    $region40: #{tpu_custom_call.1} parent=1 // pred_region
      %s124 = ssub.s32 1024, 1024
      %125 = vsyncadd [#allocation18], %s124
      %s126 = sshll.u32 [#allocation17], 4
      %s127 = int_to_ptr.vmem [resolvable:$true] %s126
      %132 = dma.hbm_to_vmem [thread:$0]  %s9, 1024, %s127, [#allocation18], 128, 128, 8
    $region41: #{tpu_custom_call.1} parent=1 // pred_fallthru
      _
    // Predicated region
    $region42: #{tpu_custom_call.1} parent=1 // pred_check
      _
    $region43: #{tpu_custom_call.1} parent=1 // pred_check_branch
      %134 = sbr.rel (0) target = $region45
    $region44: #{tpu_custom_call.1} parent=1 // pred_region
      %135 = dma.done [#allocation3], 128
    $region45: #{tpu_custom_call.1} parent=1 // pred_fallthru
      _
    // Predicated region
    $region46: #{tpu_custom_call.1} parent=1 // pred_check
      _
    $region47: #{tpu_custom_call.1} parent=1 // pred_check_branch
      %137 = sbr.rel (0) target = $region49
    $region48: #{tpu_custom_call.1} parent=1 // pred_region
      %138 = dma.done [#allocation6], 128
    $region49: #{tpu_custom_call.1} parent=1 // pred_fallthru
      _
    // Predicated region
    $region50: #{tpu_custom_call.1} parent=1 // pred_check
      _
    $region51: #{tpu_custom_call.1} parent=1 // pred_check_branch
      %140 = sbr.rel (0) target = $region53
    $region52: #{tpu_custom_call.1} parent=1 // pred_region
      %141 = dma.done [#allocation6], 128
    $region53: #{tpu_custom_call.1} parent=1 // pred_fallthru
      _
    // Predicated region
    $region54: #{tpu_custom_call.1} parent=1 // pred_check
      _
    $region55: #{tpu_custom_call.1} parent=1 // pred_check_branch
      %143 = sbr.rel (0) target = $region57
    $region56: #{tpu_custom_call.1} parent=1 // pred_region
      %144 = dma.done [#allocation9], 128
    $region57: #{tpu_custom_call.1} parent=1 // pred_fallthru
      _
    // Predicated region
    $region58: #{tpu_custom_call.1} parent=1 // pred_check
      _
    $region59: #{tpu_custom_call.1} parent=1 // pred_check_branch
      %146 = sbr.rel (0) target = $region61
    $region60: #{tpu_custom_call.1} parent=1 // pred_region
      %147 = dma.done [#allocation9], 16
    $region61: #{tpu_custom_call.1} parent=1 // pred_fallthru
      _
    // Predicated region
    $region62: #{tpu_custom_call.1} parent=1 // pred_check
      _
    $region63: #{tpu_custom_call.1} parent=1 // pred_check_branch
      %149 = sbr.rel (0) target = $region65
    $region64: #{tpu_custom_call.1} parent=1 // pred_region
      %150 = dma.done [#allocation12], 16
    $region65: #{tpu_custom_call.1} parent=1 // pred_fallthru
      _
    // Predicated region
    $region66: #{tpu_custom_call.1} parent=1 // pred_check
      _
    $region67: #{tpu_custom_call.1} parent=1 // pred_check_branch
      %152 = sbr.rel (0) target = $region69
    $region68: #{tpu_custom_call.1} parent=1 // pred_region
      %153 = dma.done [#allocation12], 2048
    $region69: #{tpu_custom_call.1} parent=1 // pred_fallthru
      _
    // Predicated region
    $region70: #{tpu_custom_call.1} parent=1 // pred_check
      _
    $region71: #{tpu_custom_call.1} parent=1 // pred_check_branch
      %155 = sbr.rel (0) target = $region73
    $region72: #{tpu_custom_call.1} parent=1 // pred_region
      %156 = dma.done [#allocation15], 1024
    $region73: #{tpu_custom_call.1} parent=1 // pred_fallthru
      _
    // Predicated region
    $region74: #{tpu_custom_call.1} parent=1 // pred_check
      _
    $region75: #{tpu_custom_call.1} parent=1 // pred_check_branch
      %158 = sbr.rel (0) target = $region77
    $region76: #{tpu_custom_call.1} parent=1 // pred_region
      %159 = dma.done [#allocation15], 4096
    $region77: #{tpu_custom_call.1} parent=1 // pred_fallthru
      _
    // Predicated region
    $region78: #{tpu_custom_call.1} parent=1 // pred_check
      _
    $region79: #{tpu_custom_call.1} parent=1 // pred_check_branch
      %161 = sbr.rel (0) target = $region81
    $region80: #{tpu_custom_call.1} parent=1 // pred_region
      %162 = dma.done [#allocation18], 1024
    $region81: #{tpu_custom_call.1} parent=1 // pred_fallthru
      _
    %v163 = vld [vmem:[#allocation7] sm:$0xff]
    %v164 = vld [vmem:[#allocation8] sm:$0xff]
    %v165 = vld [vmem:[#allocation2] sm:$0xff]
    %v166 = vld [vmem:[#allocation5] sm:$0xff]
    %v167 = vadd.f32 %v165, %v166
    %v168 = vld [vmem:[#allocation10] sm:$0x1]
    %v169 = vmul.f32 %v167, %v167
    %vm170 = vcmask 523264
    %v171 = vsel %vm170, %v169, 0.0
    %172 = vadd.xlane.f32.xlu0 %v171
    %v173 = vpop.xlane.xlu0 %172
    %v174 = vrcp.pop 64.0
    %v175 = vmul.f32 %v173, %v174
    %v176 = vadd.f32 %v175, 1e-06
    %v177 = vrsqrt.pop %v176
    %v178 = vmul.f32 %v167, %v177
    %v180 = vlaneseq
    %v181 = vshrl.u32 %v180, 7
    %v182 = vsub.s32 0, %v181
    %v183 = vrot.slane %v168, %v182
    %v185 = vmul.f32 %v178, %v183
    %v186 = vld [vmem:[#allocation13] sm:$0xff]
    %v187 = vld [vmem:[#allocation13 + $0x8] sm:$0xff]
    %v188 = vld [vmem:[#allocation13 + $0x10] sm:$0xff]
    %v189 = vld [vmem:[#allocation13 + $0x18] sm:$0xff]
    %v190 = vld [vmem:[#allocation13 + $0x20] sm:$0xff]
    %v191 = vld [vmem:[#allocation13 + $0x28] sm:$0xff]
    %v192 = vld [vmem:[#allocation13 + $0x30] sm:$0xff]
    %v193 = vld [vmem:[#allocation13 + $0x38] sm:$0xff]
    %v194 = vld [vmem:[#allocation13 + $0x40] sm:$0xff]
    %v195 = vld [vmem:[#allocation13 + $0x48] sm:$0xff]
    %v196 = vld [vmem:[#allocation13 + $0x50] sm:$0xff]
    %v197 = vld [vmem:[#allocation13 + $0x58] sm:$0xff]
    %v198 = vld [vmem:[#allocation13 + $0x60] sm:$0xff]
    %v199 = vld [vmem:[#allocation13 + $0x68] sm:$0xff]
    %v200 = vld [vmem:[#allocation13 + $0x70] sm:$0xff]
    %v201 = vld [vmem:[#allocation13 + $0x78] sm:$0xff]
    %v203 = vsel %vm170, %v185, 0
    %v206 = vsel %vm170, %v186, 0
    %v209 = vsel %vm170, %v187, 0
    %v212 = vsel %vm170, %v188, 0
    %v215 = vsel %vm170, %v189, 0
    %v218 = vsel %vm170, %v190, 0
    %v221 = vsel %vm170, %v191, 0
    %v224 = vsel %vm170, %v192, 0
    %v227 = vsel %vm170, %v193, 0
    %v230 = vsel %vm170, %v194, 0
    %v233 = vsel %vm170, %v195, 0
    %v236 = vsel %vm170, %v196, 0
    %v239 = vsel %vm170, %v197, 0
    %v242 = vsel %vm170, %v198, 0
    %v245 = vsel %vm170, %v199, 0
    %v248 = vsel %vm170, %v200, 0
    %v251 = vsel %vm170, %v201, 0
    %253 = vmatprep.subr.mxu0 0.0
    %254 = vmatpush1.xpose.msra.mxu0 %v206
    %255 = vmatprep.subr.mxu0 0.0
    %256 = vmatpush1.xpose.msra.mxu0 %v209
    %257 = vmatprep.subr.mxu0 0.0
    %258 = vmatpush1.xpose.msra.mxu0 %v212
    %259 = vmatprep.subr.mxu0 0.0
    %260 = vmatpush1.xpose.msra.mxu0 %v215
    %261 = vmatprep.subr.mxu0 0.0
    %262 = vmatpush1.xpose.msra.mxu0 %v218
    %263 = vmatprep.subr.mxu0 0.0
    %264 = vmatpush1.xpose.msra.mxu0 %v221
    %265 = vmatprep.subr.mxu0 0.0
    %266 = vmatpush1.xpose.msra.mxu0 %v224
    %267 = vmatprep.subr.mxu0 0.0
    %268 = vmatpush1.xpose.msra.mxu0 %v227
    %269 = vmatprep.subr.mxu0 0.0
    %270 = vmatpush1.xpose.msra.mxu0 %v230
    %271 = vmatprep.subr.mxu0 0.0
    %272 = vmatpush1.xpose.msra.mxu0 %v233
    %273 = vmatprep.subr.mxu0 0.0
    %274 = vmatpush1.xpose.msra.mxu0 %v236
    %275 = vmatprep.subr.mxu0 0.0
    %276 = vmatpush1.xpose.msra.mxu0 %v239
    %277 = vmatprep.subr.mxu0 0.0
    %278 = vmatpush1.xpose.msra.mxu0 %v242
    %279 = vmatprep.subr.mxu0 0.0
    %280 = vmatpush1.xpose.msra.mxu0 %v245
    %281 = vmatprep.subr.mxu0 0.0
    %282 = vmatpush1.xpose.msra.mxu0 %v248
    %283 = vmatprep.subr.mxu0 0.0
    %284 = vmatpush1.xpose.msra.mxu0 %v251
    %285 = vmatprep.subr.mxu0 0.0
    %286 = vmatpush1.xpose.msra.mxu0 0.0
    %287 = vmatprep.subr.mxu0 0.0
    %288 = vmatpush1.xpose.msra.mxu0 0.0
    %289 = vmatprep.subr.mxu0 0.0
    %290 = vmatpush1.xpose.msra.mxu0 0.0
    %291 = vmatprep.subr.mxu0 0.0
    %292 = vmatpush1.xpose.msra.mxu0 0.0
    %293 = vmatprep.subr.mxu0 0.0
    %294 = vmatpush1.xpose.msra.mxu0 0.0
    %295 = vmatprep.subr.mxu0 0.0
    %296 = vmatpush1.xpose.msra.mxu0 0.0
    %297 = vmatprep.subr.mxu0 0.0
    %298 = vmatpush1.xpose.msra.mxu0 0.0
    %299 = vmatprep.subr.mxu0 0.0
    %300 = vmatpush1.xpose.msra.mxu0 0.0
    %301 = vmatprep.subr.mxu0 0.0
    %302 = vmatpush1.xpose.msra.mxu0 0.0
    %303 = vmatprep.subr.mxu0 0.0
    %304 = vmatpush1.xpose.msra.mxu0 0.0
    %305 = vmatprep.subr.mxu0 0.0
    %306 = vmatpush1.xpose.msra.mxu0 0.0
    %307 = vmatprep.subr.mxu0 0.0
    %308 = vmatpush1.xpose.msra.mxu0 0.0
    %309 = vmatprep.subr.mxu0 0.0
    %310 = vmatpush1.xpose.msra.mxu0 0.0
    %311 = vmatprep.subr.mxu0 0.0
    %312 = vmatpush1.xpose.msra.mxu0 0.0
    %313 = vmatprep.subr.mxu0 0.0
    %314 = vmatpush1.xpose.msra.mxu0 0.0
    %315 = vmatprep.subr.mxu0 0.0
    %316 = vmatpush1.xpose.msra.mxu0 0.0
    %317 = vmatprep.mubr.f32.mxu0 0.0
    %318 = vmatmul.mubr.f32.gmra.mrb[0].mxu0 %v203
    %v319 = vpop.f32.mrb[0].mxu0
    %v320 = vadd.f32 0.0, %v319
    %v321 = vpop.f32.mrb[0].mxu0
    %322 = vdwg.mxu0
    %v323 = vsub.f32 0.0, %v320
    %325 = vrot.lane.b32.xlu0 %v323, 56
    %v326 = vpop.permute.xlu0 %325
    %329 = vrot.lane.b32.xlu0 %v320, 72
    %v330 = vpop.permute.xlu0 %329
    %vm332 = vcmask 64512
    %v333 = vsel %vm332, %v326, %v330
    %335 = vrot.lane.b32.xlu0 %v163, 64
    %v336 = vpop.permute.xlu0 %335
    %v338 = vmul.f32 %v320, %v336
    %v339 = vmul.f32 %v333, %v164
    %341 = vrot.lane.b32.xlu0 %v339, 64
    %v342 = vpop.permute.xlu0 %341
    %v344 = vadd.f32 %v338, %v342
    %345 = vrot.lane.b32.xlu0 %v323, 40
    %v346 = vpop.permute.xlu0 %345
    %348 = vrot.lane.b32.xlu0 %v320, 56
    %v349 = vpop.permute.xlu0 %348
    %v351 = vsel %vm332, %v346, %v349
    %352 = vrot.lane.b32.xlu0 %v163, 80
    %v353 = vpop.permute.xlu0 %352
    %v355 = vmul.f32 %v320, %v353
    %v356 = vmul.f32 %v351, %v164
    %358 = vrot.lane.b32.xlu0 %v356, 80
    %v359 = vpop.permute.xlu0 %358
    %v361 = vadd.f32 %v355, %v359
    %v362 = vlaneseq
    %v363 = vshrl.u32 %v362, 7
    %v364 = vlaneseq
    %v365 = vand.u32 %v364, 127
    %vm366 = vcmp.le.s32.totalorder %v365, %v363
    %367 = vrot.lane.b32.xlu0 %v323, 120
    %v368 = vpop.permute.xlu0 %367
    %370 = vrot.lane.b32.xlu0 %v320, 8
    %v371 = vpop.permute.xlu0 %370
    %v373 = vsel %vm332, %v368, %v371
    %v374 = vmul.f32 %v320, %v163
    %v375 = vmul.f32 %v373, %v164
    %v376 = vadd.f32 %v374, %v375
    %v377 = vmul.f32 %v376, 0.25
    %379 = vrot.lane.b32.xlu0 %v344, 64
    %v380 = vpop.permute.xlu0 %379
    %vm381 = vcmask 130048
    %v383 = vsel %vm381, %v377, 0
    %v385 = vsel %vm381, %v380, 0
    %387 = vmatprep.subr.mxu0 0.0
    %388 = vmatpush1.xpose.msra.mxu0 %v385
    %389 = vmatprep.subr.mxu0 0.0
    %390 = vmatpush1.xpose.msra.mxu0 0.0
    %391 = vmatprep.subr.mxu0 0.0
    %392 = vmatpush1.xpose.msra.mxu0 0.0
    %393 = vmatprep.subr.mxu0 0.0
    %394 = vmatpush1.xpose.msra.mxu0 0.0
    %395 = vmatprep.subr.mxu0 0.0
    %396 = vmatpush1.xpose.msra.mxu0 0.0
    %397 = vmatprep.subr.mxu0 0.0
    %398 = vmatpush1.xpose.msra.mxu0 0.0
    %399 = vmatprep.subr.mxu0 0.0
    %400 = vmatpush1.xpose.msra.mxu0 0.0
    %401 = vmatprep.subr.mxu0 0.0
    %402 = vmatpush1.xpose.msra.mxu0 0.0
    %403 = vmatprep.subr.mxu0 0.0
    %404 = vmatpush1.xpose.msra.mxu0 0.0
    %405 = vmatprep.subr.mxu0 0.0
    %406 = vmatpush1.xpose.msra.mxu0 0.0
    %407 = vmatprep.subr.mxu0 0.0
    %408 = vmatpush1.xpose.msra.mxu0 0.0
    %409 = vmatprep.subr.mxu0 0.0
    %410 = vmatpush1.xpose.msra.mxu0 0.0
    %411 = vmatprep.subr.mxu0 0.0
    %412 = vmatpush1.xpose.msra.mxu0 0.0
    %413 = vmatprep.subr.mxu0 0.0
    %414 = vmatpush1.xpose.msra.mxu0 0.0
    %415 = vmatprep.subr.mxu0 0.0
    %416 = vmatpush1.xpose.msra.mxu0 0.0
    %417 = vmatprep.subr.mxu0 0.0
    %418 = vmatpush1.xpose.msra.mxu0 0.0
    %419 = vmatprep.subr.mxu0 0.0
    %420 = vmatpush1.xpose.msra.mxu0 0.0
    %421 = vmatprep.subr.mxu0 0.0
    %422 = vmatpush1.xpose.msra.mxu0 0.0
    %423 = vmatprep.subr.mxu0 0.0
    %424 = vmatpush1.xpose.msra.mxu0 0.0
    %425 = vmatprep.subr.mxu0 0.0
    %426 = vmatpush1.xpose.msra.mxu0 0.0
    %427 = vmatprep.subr.mxu0 0.0
    %428 = vmatpush1.xpose.msra.mxu0 0.0
    %429 = vmatprep.subr.mxu0 0.0
    %430 = vmatpush1.xpose.msra.mxu0 0.0
    %431 = vmatprep.subr.mxu0 0.0
    %432 = vmatpush1.xpose.msra.mxu0 0.0
    %433 = vmatprep.subr.mxu0 0.0
    %434 = vmatpush1.xpose.msra.mxu0 0.0
    %435 = vmatprep.subr.mxu0 0.0
    %436 = vmatpush1.xpose.msra.mxu0 0.0
    %437 = vmatprep.subr.mxu0 0.0
    %438 = vmatpush1.xpose.msra.mxu0 0.0
    %439 = vmatprep.subr.mxu0 0.0
    %440 = vmatpush1.xpose.msra.mxu0 0.0
    %441 = vmatprep.subr.mxu0 0.0
    %442 = vmatpush1.xpose.msra.mxu0 0.0
    %443 = vmatprep.subr.mxu0 0.0
    %444 = vmatpush1.xpose.msra.mxu0 0.0
    %445 = vmatprep.subr.mxu0 0.0
    %446 = vmatpush1.xpose.msra.mxu0 0.0
    %447 = vmatprep.subr.mxu0 0.0
    %448 = vmatpush1.xpose.msra.mxu0 0.0
    %449 = vmatprep.subr.mxu0 0.0
    %450 = vmatpush1.xpose.msra.mxu0 0.0
    %451 = vmatprep.mubr.f32.mxu0 0.0
    %452 = vmatmul.mubr.f32.gmra.mrb[0].mxu0 %v383
    %v453 = vpop.f32.mrb[0].mxu0
    %v454 = vadd.f32 0.0, %v453
    %v455 = vpop.f32.mrb[0].mxu0
    %456 = vdwg.mxu0
    %v457 = vsel %vm366, %v454, -inf
    %v458 = vsel %vm332, %v457, -inf
    %459 = vmax.xlane.f32.xlu0 %v458
    %v460 = vpop.xlane.xlu0 %459
    %v461 = vsub.f32 %v457, %v460
    %v462 = vmul.f32 %v461, 1.442695
    %v463 = vpow.pop %v462
    %v464 = vsel %vm332, %v463, 0.0
    %465 = vadd.xlane.f32.xlu0 %v464
    %v466 = vpop.xlane.xlu0 %465
    %v467 = vrcp.pop %v466
    %v468 = vmul.f32 %v463, %v467
    %469 = vrot.lane.b32.xlu0 %v320, 32
    %v470 = vpop.permute.xlu0 %469
    %v473 = vsel %vm332, %v468, 0
    %475 = vmatprep.subr.mxu0 0.0
    %476 = vmatpush1.msra.mxu0 %v470
    %477 = vmatprep.subr.mxu0 0.0
    %478 = vmatpush1.msra.mxu0 0.0
    %479 = vmatprep.subr.mxu0 0.0
    %480 = vmatpush1.msra.mxu0 0.0
    %481 = vmatprep.subr.mxu0 0.0
    %482 = vmatpush1.msra.mxu0 0.0
    %483 = vmatprep.subr.mxu0 0.0
    %484 = vmatpush1.msra.mxu0 0.0
    %485 = vmatprep.subr.mxu0 0.0
    %486 = vmatpush1.msra.mxu0 0.0
    %487 = vmatprep.subr.mxu0 0.0
    %488 = vmatpush1.msra.mxu0 0.0
    %489 = vmatprep.subr.mxu0 0.0
    %490 = vmatpush1.msra.mxu0 0.0
    %491 = vmatprep.subr.mxu0 0.0
    %492 = vmatpush1.msra.mxu0 0.0
    %493 = vmatprep.subr.mxu0 0.0
    %494 = vmatpush1.msra.mxu0 0.0
    %495 = vmatprep.subr.mxu0 0.0
    %496 = vmatpush1.msra.mxu0 0.0
    %497 = vmatprep.subr.mxu0 0.0
    %498 = vmatpush1.msra.mxu0 0.0
    %499 = vmatprep.subr.mxu0 0.0
    %500 = vmatpush1.msra.mxu0 0.0
    %501 = vmatprep.subr.mxu0 0.0
    %502 = vmatpush1.msra.mxu0 0.0
    %503 = vmatprep.subr.mxu0 0.0
    %504 = vmatpush1.msra.mxu0 0.0
    %505 = vmatprep.subr.mxu0 0.0
    %506 = vmatpush1.msra.mxu0 0.0
    %507 = vmatprep.subr.mxu0 0.0
    %508 = vmatpush1.msra.mxu0 0.0
    %509 = vmatprep.subr.mxu0 0.0
    %510 = vmatpush1.msra.mxu0 0.0
    %511 = vmatprep.subr.mxu0 0.0
    %512 = vmatpush1.msra.mxu0 0.0
    %513 = vmatprep.subr.mxu0 0.0
    %514 = vmatpush1.msra.mxu0 0.0
    %515 = vmatprep.subr.mxu0 0.0
    %516 = vmatpush1.msra.mxu0 0.0
    %517 = vmatprep.subr.mxu0 0.0
    %518 = vmatpush1.msra.mxu0 0.0
    %519 = vmatprep.subr.mxu0 0.0
    %520 = vmatpush1.msra.mxu0 0.0
    %521 = vmatprep.subr.mxu0 0.0
    %522 = vmatpush1.msra.mxu0 0.0
    %523 = vmatprep.subr.mxu0 0.0
    %524 = vmatpush1.msra.mxu0 0.0
    %525 = vmatprep.subr.mxu0 0.0
    %526 = vmatpush1.msra.mxu0 0.0
    %527 = vmatprep.subr.mxu0 0.0
    %528 = vmatpush1.msra.mxu0 0.0
    %529 = vmatprep.subr.mxu0 0.0
    %530 = vmatpush1.msra.mxu0 0.0
    %531 = vmatprep.subr.mxu0 0.0
    %532 = vmatpush1.msra.mxu0 0.0
    %533 = vmatprep.subr.mxu0 0.0
    %534 = vmatpush1.msra.mxu0 0.0
    %535 = vmatprep.subr.mxu0 0.0
    %536 = vmatpush1.msra.mxu0 0.0
    %537 = vmatprep.subr.mxu0 0.0
    %538 = vmatpush1.msra.mxu0 0.0
    %539 = vmatprep.mubr.f32.mxu0 0.0
    %540 = vmatmul.mubr.f32.gmra.mrb[0].mxu0 %v473
    %v541 = vpop.f32.mrb[0].mxu0
    %v542 = vadd.f32 0.0, %v541
    %v543 = vpop.f32.mrb[0].mxu0
    %544 = vdwg.mxu0
    %545 = vrot.lane.b32.xlu0 %v323, 104
    %v546 = vpop.permute.xlu0 %545
    %548 = vrot.lane.b32.xlu0 %v320, 120
    %v549 = vpop.permute.xlu0 %548
    %v551 = vsel %vm332, %v546, %v549
    %552 = vrot.lane.b32.xlu0 %v163, 16
    %v553 = vpop.permute.xlu0 %552
    %v555 = vmul.f32 %v320, %v553
    %v556 = vmul.f32 %v551, %v164
    %558 = vrot.lane.b32.xlu0 %v556, 16
    %v559 = vpop.permute.xlu0 %558
    %v561 = vadd.f32 %v555, %v559
    %v562 = vmul.f32 %v561, 0.25
    %564 = vrot.lane.b32.xlu0 %v562, 112
    %v565 = vpop.permute.xlu0 %564
    %v566 = vsel %vm381, %v565, 0
    %568 = vmatprep.subr.mxu0 0.0
    %569 = vmatpush1.xpose.msra.mxu0 %v385
    %570 = vmatprep.subr.mxu0 0.0
    %571 = vmatpush1.xpose.msra.mxu0 0.0
    %572 = vmatprep.subr.mxu0 0.0
    %573 = vmatpush1.xpose.msra.mxu0 0.0
    %574 = vmatprep.subr.mxu0 0.0
    %575 = vmatpush1.xpose.msra.mxu0 0.0
    %576 = vmatprep.subr.mxu0 0.0
    %577 = vmatpush1.xpose.msra.mxu0 0.0
    %578 = vmatprep.subr.mxu0 0.0
    %579 = vmatpush1.xpose.msra.mxu0 0.0
    %580 = vmatprep.subr.mxu0 0.0
    %581 = vmatpush1.xpose.msra.mxu0 0.0
    %582 = vmatprep.subr.mxu0 0.0
    %583 = vmatpush1.xpose.msra.mxu0 0.0
    %584 = vmatprep.subr.mxu0 0.0
    %585 = vmatpush1.xpose.msra.mxu0 0.0
    %586 = vmatprep.subr.mxu0 0.0
    %587 = vmatpush1.xpose.msra.mxu0 0.0
    %588 = vmatprep.subr.mxu0 0.0
    %589 = vmatpush1.xpose.msra.mxu0 0.0
    %590 = vmatprep.subr.mxu0 0.0
    %591 = vmatpush1.xpose.msra.mxu0 0.0
    %592 = vmatprep.subr.mxu0 0.0
    %593 = vmatpush1.xpose.msra.mxu0 0.0
    %594 = vmatprep.subr.mxu0 0.0
    %595 = vmatpush1.xpose.msra.mxu0 0.0
    %596 = vmatprep.subr.mxu0 0.0
    %597 = vmatpush1.xpose.msra.mxu0 0.0
    %598 = vmatprep.subr.mxu0 0.0
    %599 = vmatpush1.xpose.msra.mxu0 0.0
    %600 = vmatprep.subr.mxu0 0.0
    %601 = vmatpush1.xpose.msra.mxu0 0.0
    %602 = vmatprep.subr.mxu0 0.0
    %603 = vmatpush1.xpose.msra.mxu0 0.0
    %604 = vmatprep.subr.mxu0 0.0
    %605 = vmatpush1.xpose.msra.mxu0 0.0
    %606 = vmatprep.subr.mxu0 0.0
    %607 = vmatpush1.xpose.msra.mxu0 0.0
    %608 = vmatprep.subr.mxu0 0.0
    %609 = vmatpush1.xpose.msra.mxu0 0.0
    %610 = vmatprep.subr.mxu0 0.0
    %611 = vmatpush1.xpose.msra.mxu0 0.0
    %612 = vmatprep.subr.mxu0 0.0
    %613 = vmatpush1.xpose.msra.mxu0 0.0
    %614 = vmatprep.subr.mxu0 0.0
    %615 = vmatpush1.xpose.msra.mxu0 0.0
    %616 = vmatprep.subr.mxu0 0.0
    %617 = vmatpush1.xpose.msra.mxu0 0.0
    %618 = vmatprep.subr.mxu0 0.0
    %619 = vmatpush1.xpose.msra.mxu0 0.0
    %620 = vmatprep.subr.mxu0 0.0
    %621 = vmatpush1.xpose.msra.mxu0 0.0
    %622 = vmatprep.subr.mxu0 0.0
    %623 = vmatpush1.xpose.msra.mxu0 0.0
    %624 = vmatprep.subr.mxu0 0.0
    %625 = vmatpush1.xpose.msra.mxu0 0.0
    %626 = vmatprep.subr.mxu0 0.0
    %627 = vmatpush1.xpose.msra.mxu0 0.0
    %628 = vmatprep.subr.mxu0 0.0
    %629 = vmatpush1.xpose.msra.mxu0 0.0
    %630 = vmatprep.subr.mxu0 0.0
    %631 = vmatpush1.xpose.msra.mxu0 0.0
    %632 = vmatprep.mubr.f32.mxu0 0.0
    %633 = vmatmul.mubr.f32.gmra.mrb[0].mxu0 %v566
    %v634 = vpop.f32.mrb[0].mxu0
    %v635 = vadd.f32 0.0, %v634
    %v636 = vpop.f32.mrb[0].mxu0
    %637 = vdwg.mxu0
    %v638 = vsel %vm366, %v635, -inf
    %v639 = vsel %vm332, %v638, -inf
    %640 = vmax.xlane.f32.xlu0 %v639
    %v641 = vpop.xlane.xlu0 %640
    %v642 = vsub.f32 %v638, %v641
    %v643 = vmul.f32 %v642, 1.442695
    %v644 = vpow.pop %v643
    %v645 = vsel %vm332, %v644, 0.0
    %646 = vadd.xlane.f32.xlu0 %v645
    %v647 = vpop.xlane.xlu0 %646
    %v648 = vrcp.pop %v647
    %v649 = vmul.f32 %v644, %v648
    %v651 = vsel %vm332, %v649, 0
    %653 = vmatprep.subr.mxu0 0.0
    %654 = vmatpush1.msra.mxu0 %v470
    %655 = vmatprep.subr.mxu0 0.0
    %656 = vmatpush1.msra.mxu0 0.0
    %657 = vmatprep.subr.mxu0 0.0
    %658 = vmatpush1.msra.mxu0 0.0
    %659 = vmatprep.subr.mxu0 0.0
    %660 = vmatpush1.msra.mxu0 0.0
    %661 = vmatprep.subr.mxu0 0.0
    %662 = vmatpush1.msra.mxu0 0.0
    %663 = vmatprep.subr.mxu0 0.0
    %664 = vmatpush1.msra.mxu0 0.0
    %665 = vmatprep.subr.mxu0 0.0
    %666 = vmatpush1.msra.mxu0 0.0
    %667 = vmatprep.subr.mxu0 0.0
    %668 = vmatpush1.msra.mxu0 0.0
    %669 = vmatprep.subr.mxu0 0.0
    %670 = vmatpush1.msra.mxu0 0.0
    %671 = vmatprep.subr.mxu0 0.0
    %672 = vmatpush1.msra.mxu0 0.0
    %673 = vmatprep.subr.mxu0 0.0
    %674 = vmatpush1.msra.mxu0 0.0
    %675 = vmatprep.subr.mxu0 0.0
    %676 = vmatpush1.msra.mxu0 0.0
    %677 = vmatprep.subr.mxu0 0.0
    %678 = vmatpush1.msra.mxu0 0.0
    %679 = vmatprep.subr.mxu0 0.0
    %680 = vmatpush1.msra.mxu0 0.0
    %681 = vmatprep.subr.mxu0 0.0
    %682 = vmatpush1.msra.mxu0 0.0
    %683 = vmatprep.subr.mxu0 0.0
    %684 = vmatpush1.msra.mxu0 0.0
    %685 = vmatprep.subr.mxu0 0.0
    %686 = vmatpush1.msra.mxu0 0.0
    %687 = vmatprep.subr.mxu0 0.0
    %688 = vmatpush1.msra.mxu0 0.0
    %689 = vmatprep.subr.mxu0 0.0
    %690 = vmatpush1.msra.mxu0 0.0
    %691 = vmatprep.subr.mxu0 0.0
    %692 = vmatpush1.msra.mxu0 0.0
    %693 = vmatprep.subr.mxu0 0.0
    %694 = vmatpush1.msra.mxu0 0.0
    %695 = vmatprep.subr.mxu0 0.0
    %696 = vmatpush1.msra.mxu0 0.0
    %697 = vmatprep.subr.mxu0 0.0
    %698 = vmatpush1.msra.mxu0 0.0
    %699 = vmatprep.subr.mxu0 0.0
    %700 = vmatpush1.msra.mxu0 0.0
    %701 = vmatprep.subr.mxu0 0.0
    %702 = vmatpush1.msra.mxu0 0.0
    %703 = vmatprep.subr.mxu0 0.0
    %704 = vmatpush1.msra.mxu0 0.0
    %705 = vmatprep.subr.mxu0 0.0
    %706 = vmatpush1.msra.mxu0 0.0
    %707 = vmatprep.subr.mxu0 0.0
    %708 = vmatpush1.msra.mxu0 0.0
    %709 = vmatprep.subr.mxu0 0.0
    %710 = vmatpush1.msra.mxu0 0.0
    %711 = vmatprep.subr.mxu0 0.0
    %712 = vmatpush1.msra.mxu0 0.0
    %713 = vmatprep.subr.mxu0 0.0
    %714 = vmatpush1.msra.mxu0 0.0
    %715 = vmatprep.subr.mxu0 0.0
    %716 = vmatpush1.msra.mxu0 0.0
    %717 = vmatprep.mubr.f32.mxu0 0.0
    %718 = vmatmul.mubr.f32.gmra.mrb[0].mxu0 %v651
    %v719 = vpop.f32.mrb[0].mxu0
    %v720 = vadd.f32 0.0, %v719
    %v721 = vpop.f32.mrb[0].mxu0
    %722 = vdwg.mxu0
    %723 = vrot.lane.b32.xlu0 %v323, 88
    %v724 = vpop.permute.xlu0 %723
    %726 = vrot.lane.b32.xlu0 %v320, 104
    %v727 = vpop.permute.xlu0 %726
    %v729 = vsel %vm332, %v724, %v727
    %730 = vrot.lane.b32.xlu0 %v163, 32
    %v731 = vpop.permute.xlu0 %730
    %v733 = vmul.f32 %v320, %v731
    %v734 = vmul.f32 %v729, %v164
    %736 = vrot.lane.b32.xlu0 %v734, 32
    %v737 = vpop.permute.xlu0 %736
    %v739 = vadd.f32 %v733, %v737
    %v740 = vmul.f32 %v739, 0.25
    %742 = vrot.lane.b32.xlu0 %v740, 96
    %v743 = vpop.permute.xlu0 %742
    %745 = vrot.lane.b32.xlu0 %v361, 48
    %v746 = vpop.permute.xlu0 %745
    %v747 = vsel %vm381, %v743, 0
    %v749 = vsel %vm381, %v746, 0
    %751 = vmatprep.subr.mxu0 0.0
    %752 = vmatpush1.xpose.msra.mxu0 %v749
    %753 = vmatprep.subr.mxu0 0.0
    %754 = vmatpush1.xpose.msra.mxu0 0.0
    %755 = vmatprep.subr.mxu0 0.0
    %756 = vmatpush1.xpose.msra.mxu0 0.0
    %757 = vmatprep.subr.mxu0 0.0
    %758 = vmatpush1.xpose.msra.mxu0 0.0
    %759 = vmatprep.subr.mxu0 0.0
    %760 = vmatpush1.xpose.msra.mxu0 0.0
    %761 = vmatprep.subr.mxu0 0.0
    %762 = vmatpush1.xpose.msra.mxu0 0.0
    %763 = vmatprep.subr.mxu0 0.0
    %764 = vmatpush1.xpose.msra.mxu0 0.0
    %765 = vmatprep.subr.mxu0 0.0
    %766 = vmatpush1.xpose.msra.mxu0 0.0
    %767 = vmatprep.subr.mxu0 0.0
    %768 = vmatpush1.xpose.msra.mxu0 0.0
    %769 = vmatprep.subr.mxu0 0.0
    %770 = vmatpush1.xpose.msra.mxu0 0.0
    %771 = vmatprep.subr.mxu0 0.0
    %772 = vmatpush1.xpose.msra.mxu0 0.0
    %773 = vmatprep.subr.mxu0 0.0
    %774 = vmatpush1.xpose.msra.mxu0 0.0
    %775 = vmatprep.subr.mxu0 0.0
    %776 = vmatpush1.xpose.msra.mxu0 0.0
    %777 = vmatprep.subr.mxu0 0.0
    %778 = vmatpush1.xpose.msra.mxu0 0.0
    %779 = vmatprep.subr.mxu0 0.0
    %780 = vmatpush1.xpose.msra.mxu0 0.0
    %781 = vmatprep.subr.mxu0 0.0
    %782 = vmatpush1.xpose.msra.mxu0 0.0
    %783 = vmatprep.subr.mxu0 0.0
    %784 = vmatpush1.xpose.msra.mxu0 0.0
    %785 = vmatprep.subr.mxu0 0.0
    %786 = vmatpush1.xpose.msra.mxu0 0.0
    %787 = vmatprep.subr.mxu0 0.0
    %788 = vmatpush1.xpose.msra.mxu0 0.0
    %789 = vmatprep.subr.mxu0 0.0
    %790 = vmatpush1.xpose.msra.mxu0 0.0
    %791 = vmatprep.subr.mxu0 0.0
    %792 = vmatpush1.xpose.msra.mxu0 0.0
    %793 = vmatprep.subr.mxu0 0.0
    %794 = vmatpush1.xpose.msra.mxu0 0.0
    %795 = vmatprep.subr.mxu0 0.0
    %796 = vmatpush1.xpose.msra.mxu0 0.0
    %797 = vmatprep.subr.mxu0 0.0
    %798 = vmatpush1.xpose.msra.mxu0 0.0
    %799 = vmatprep.subr.mxu0 0.0
    %800 = vmatpush1.xpose.msra.mxu0 0.0
    %801 = vmatprep.subr.mxu0 0.0
    %802 = vmatpush1.xpose.msra.mxu0 0.0
    %803 = vmatprep.subr.mxu0 0.0
    %804 = vmatpush1.xpose.msra.mxu0 0.0
    %805 = vmatprep.subr.mxu0 0.0
    %806 = vmatpush1.xpose.msra.mxu0 0.0
    %807 = vmatprep.subr.mxu0 0.0
    %808 = vmatpush1.xpose.msra.mxu0 0.0
    %809 = vmatprep.subr.mxu0 0.0
    %810 = vmatpush1.xpose.msra.mxu0 0.0
    %811 = vmatprep.subr.mxu0 0.0
    %812 = vmatpush1.xpose.msra.mxu0 0.0
    %813 = vmatprep.subr.mxu0 0.0
    %814 = vmatpush1.xpose.msra.mxu0 0.0
    %815 = vmatprep.mubr.f32.mxu0 0.0
    %816 = vmatmul.mubr.f32.gmra.mrb[0].mxu0 %v747
    %v817 = vpop.f32.mrb[0].mxu0
    %v818 = vadd.f32 0.0, %v817
    %v819 = vpop.f32.mrb[0].mxu0
    %820 = vdwg.mxu0
    %v821 = vsel %vm366, %v818, -inf
    %v822 = vsel %vm332, %v821, -inf
    %823 = vmax.xlane.f32.xlu0 %v822
    %v824 = vpop.xlane.xlu0 %823
    %v825 = vsub.f32 %v821, %v824
    %v826 = vmul.f32 %v825, 1.442695
    %v827 = vpow.pop %v826
    %v828 = vsel %vm332, %v827, 0.0
    %829 = vadd.xlane.f32.xlu0 %v828
    %v830 = vpop.xlane.xlu0 %829
    %v831 = vrcp.pop %v830
    %v832 = vmul.f32 %v827, %v831
    %833 = vrot.lane.b32.xlu0 %v320, 16
    %v834 = vpop.permute.xlu0 %833
    %v837 = vsel %vm332, %v832, 0
    %839 = vmatprep.subr.mxu0 0.0
    %840 = vmatpush1.msra.mxu0 %v834
    %841 = vmatprep.subr.mxu0 0.0
    %842 = vmatpush1.msra.mxu0 0.0
    %843 = vmatprep.subr.mxu0 0.0
    %844 = vmatpush1.msra.mxu0 0.0
    %845 = vmatprep.subr.mxu0 0.0
    %846 = vmatpush1.msra.mxu0 0.0
    %847 = vmatprep.subr.mxu0 0.0
    %848 = vmatpush1.msra.mxu0 0.0
    %849 = vmatprep.subr.mxu0 0.0
    %850 = vmatpush1.msra.mxu0 0.0
    %851 = vmatprep.subr.mxu0 0.0
    %852 = vmatpush1.msra.mxu0 0.0
    %853 = vmatprep.subr.mxu0 0.0
    %854 = vmatpush1.msra.mxu0 0.0
    %855 = vmatprep.subr.mxu0 0.0
    %856 = vmatpush1.msra.mxu0 0.0
    %857 = vmatprep.subr.mxu0 0.0
    %858 = vmatpush1.msra.mxu0 0.0
    %859 = vmatprep.subr.mxu0 0.0
    %860 = vmatpush1.msra.mxu0 0.0
    %861 = vmatprep.subr.mxu0 0.0
    %862 = vmatpush1.msra.mxu0 0.0
    %863 = vmatprep.subr.mxu0 0.0
    %864 = vmatpush1.msra.mxu0 0.0
    %865 = vmatprep.subr.mxu0 0.0
    %866 = vmatpush1.msra.mxu0 0.0
    %867 = vmatprep.subr.mxu0 0.0
    %868 = vmatpush1.msra.mxu0 0.0
    %869 = vmatprep.subr.mxu0 0.0
    %870 = vmatpush1.msra.mxu0 0.0
    %871 = vmatprep.subr.mxu0 0.0
    %872 = vmatpush1.msra.mxu0 0.0
    %873 = vmatprep.subr.mxu0 0.0
    %874 = vmatpush1.msra.mxu0 0.0
    %875 = vmatprep.subr.mxu0 0.0
    %876 = vmatpush1.msra.mxu0 0.0
    %877 = vmatprep.subr.mxu0 0.0
    %878 = vmatpush1.msra.mxu0 0.0
    %879 = vmatprep.subr.mxu0 0.0
    %880 = vmatpush1.msra.mxu0 0.0
    %881 = vmatprep.subr.mxu0 0.0
    %882 = vmatpush1.msra.mxu0 0.0
    %883 = vmatprep.subr.mxu0 0.0
    %884 = vmatpush1.msra.mxu0 0.0
    %885 = vmatprep.subr.mxu0 0.0
    %886 = vmatpush1.msra.mxu0 0.0
    %887 = vmatprep.subr.mxu0 0.0
    %888 = vmatpush1.msra.mxu0 0.0
    %889 = vmatprep.subr.mxu0 0.0
    %890 = vmatpush1.msra.mxu0 0.0
    %891 = vmatprep.subr.mxu0 0.0
    %892 = vmatpush1.msra.mxu0 0.0
    %893 = vmatprep.subr.mxu0 0.0
    %894 = vmatpush1.msra.mxu0 0.0
    %895 = vmatprep.subr.mxu0 0.0
    %896 = vmatpush1.msra.mxu0 0.0
    %897 = vmatprep.subr.mxu0 0.0
    %898 = vmatpush1.msra.mxu0 0.0
    %899 = vmatprep.subr.mxu0 0.0
    %900 = vmatpush1.msra.mxu0 0.0
    %901 = vmatprep.subr.mxu0 0.0
    %902 = vmatpush1.msra.mxu0 0.0
    %903 = vmatprep.mubr.f32.mxu0 0.0
    %904 = vmatmul.mubr.f32.gmra.mrb[0].mxu0 %v837
    %v905 = vpop.f32.mrb[0].mxu0
    %v906 = vadd.f32 0.0, %v905
    %v907 = vpop.f32.mrb[0].mxu0
    %908 = vdwg.mxu0
    %909 = vrot.lane.b32.xlu0 %v323, 72
    %v910 = vpop.permute.xlu0 %909
    %912 = vrot.lane.b32.xlu0 %v320, 88
    %v913 = vpop.permute.xlu0 %912
    %v915 = vsel %vm332, %v910, %v913
    %916 = vrot.lane.b32.xlu0 %v163, 48
    %v917 = vpop.permute.xlu0 %916
    %v919 = vmul.f32 %v320, %v917
    %v920 = vmul.f32 %v915, %v164
    %922 = vrot.lane.b32.xlu0 %v920, 48
    %v923 = vpop.permute.xlu0 %922
    %v925 = vadd.f32 %v919, %v923
    %v926 = vmul.f32 %v925, 0.25
    %928 = vrot.lane.b32.xlu0 %v926, 80
    %v929 = vpop.permute.xlu0 %928
    %v930 = vsel %vm381, %v929, 0
    %932 = vmatprep.subr.mxu0 0.0
    %933 = vmatpush1.xpose.msra.mxu0 %v749
    %934 = vmatprep.subr.mxu0 0.0
    %935 = vmatpush1.xpose.msra.mxu0 0.0
    %936 = vmatprep.subr.mxu0 0.0
    %937 = vmatpush1.xpose.msra.mxu0 0.0
    %938 = vmatprep.subr.mxu0 0.0
    %939 = vmatpush1.xpose.msra.mxu0 0.0
    %940 = vmatprep.subr.mxu0 0.0
    %941 = vmatpush1.xpose.msra.mxu0 0.0
    %942 = vmatprep.subr.mxu0 0.0
    %943 = vmatpush1.xpose.msra.mxu0 0.0
    %944 = vmatprep.subr.mxu0 0.0
    %945 = vmatpush1.xpose.msra.mxu0 0.0
    %946 = vmatprep.subr.mxu0 0.0
    %947 = vmatpush1.xpose.msra.mxu0 0.0
    %948 = vmatprep.subr.mxu0 0.0
    %949 = vmatpush1.xpose.msra.mxu0 0.0
    %950 = vmatprep.subr.mxu0 0.0
    %951 = vmatpush1.xpose.msra.mxu0 0.0
    %952 = vmatprep.subr.mxu0 0.0
    %953 = vmatpush1.xpose.msra.mxu0 0.0
    %954 = vmatprep.subr.mxu0 0.0
    %955 = vmatpush1.xpose.msra.mxu0 0.0
    %956 = vmatprep.subr.mxu0 0.0
    %957 = vmatpush1.xpose.msra.mxu0 0.0
    %958 = vmatprep.subr.mxu0 0.0
    %959 = vmatpush1.xpose.msra.mxu0 0.0
    %960 = vmatprep.subr.mxu0 0.0
    %961 = vmatpush1.xpose.msra.mxu0 0.0
    %962 = vmatprep.subr.mxu0 0.0
    %963 = vmatpush1.xpose.msra.mxu0 0.0
    %964 = vmatprep.subr.mxu0 0.0
    %965 = vmatpush1.xpose.msra.mxu0 0.0
    %966 = vmatprep.subr.mxu0 0.0
    %967 = vmatpush1.xpose.msra.mxu0 0.0
    %968 = vmatprep.subr.mxu0 0.0
    %969 = vmatpush1.xpose.msra.mxu0 0.0
    %970 = vmatprep.subr.mxu0 0.0
    %971 = vmatpush1.xpose.msra.mxu0 0.0
    %972 = vmatprep.subr.mxu0 0.0
    %973 = vmatpush1.xpose.msra.mxu0 0.0
    %974 = vmatprep.subr.mxu0 0.0
    %975 = vmatpush1.xpose.msra.mxu0 0.0
    %976 = vmatprep.subr.mxu0 0.0
    %977 = vmatpush1.xpose.msra.mxu0 0.0
    %978 = vmatprep.subr.mxu0 0.0
    %979 = vmatpush1.xpose.msra.mxu0 0.0
    %980 = vmatprep.subr.mxu0 0.0
    %981 = vmatpush1.xpose.msra.mxu0 0.0
    %982 = vmatprep.subr.mxu0 0.0
    %983 = vmatpush1.xpose.msra.mxu0 0.0
    %984 = vmatprep.subr.mxu0 0.0
    %985 = vmatpush1.xpose.msra.mxu0 0.0
    %986 = vmatprep.subr.mxu0 0.0
    %987 = vmatpush1.xpose.msra.mxu0 0.0
    %988 = vmatprep.subr.mxu0 0.0
    %989 = vmatpush1.xpose.msra.mxu0 0.0
    %990 = vmatprep.subr.mxu0 0.0
    %991 = vmatpush1.xpose.msra.mxu0 0.0
    %992 = vmatprep.subr.mxu0 0.0
    %993 = vmatpush1.xpose.msra.mxu0 0.0
    %994 = vmatprep.subr.mxu0 0.0
    %995 = vmatpush1.xpose.msra.mxu0 0.0
    %996 = vmatprep.mubr.f32.mxu0 0.0
    %997 = vmatmul.mubr.f32.gmra.mrb[0].mxu0 %v930
    %v998 = vpop.f32.mrb[0].mxu0
    %v999 = vadd.f32 0.0, %v998
    %v1000 = vpop.f32.mrb[0].mxu0
    %1001 = vdwg.mxu0
    %v1002 = vsel %vm366, %v999, -inf
    %v1003 = vsel %vm332, %v1002, -inf
    %1004 = vmax.xlane.f32.xlu0 %v1003
    %v1005 = vpop.xlane.xlu0 %1004
    %v1006 = vsub.f32 %v1002, %v1005
    %v1007 = vmul.f32 %v1006, 1.442695
    %v1008 = vpow.pop %v1007
    %v1009 = vsel %vm332, %v1008, 0.0
    %1010 = vadd.xlane.f32.xlu0 %v1009
    %v1011 = vpop.xlane.xlu0 %1010
    %v1012 = vrcp.pop %v1011
    %v1013 = vmul.f32 %v1008, %v1012
    %v1015 = vsel %vm332, %v1013, 0
    %1017 = vmatprep.subr.mxu0 0.0
    %1018 = vmatpush1.msra.mxu0 %v834
    %1019 = vmatprep.subr.mxu0 0.0
    %1020 = vmatpush1.msra.mxu0 0.0
    %1021 = vmatprep.subr.mxu0 0.0
    %1022 = vmatpush1.msra.mxu0 0.0
    %1023 = vmatprep.subr.mxu0 0.0
    %1024 = vmatpush1.msra.mxu0 0.0
    %1025 = vmatprep.subr.mxu0 0.0
    %1026 = vmatpush1.msra.mxu0 0.0
    %1027 = vmatprep.subr.mxu0 0.0
    %1028 = vmatpush1.msra.mxu0 0.0
    %1029 = vmatprep.subr.mxu0 0.0
    %1030 = vmatpush1.msra.mxu0 0.0
    %1031 = vmatprep.subr.mxu0 0.0
    %1032 = vmatpush1.msra.mxu0 0.0
    %1033 = vmatprep.subr.mxu0 0.0
    %1034 = vmatpush1.msra.mxu0 0.0
    %1035 = vmatprep.subr.mxu0 0.0
    %1036 = vmatpush1.msra.mxu0 0.0
    %1037 = vmatprep.subr.mxu0 0.0
    %1038 = vmatpush1.msra.mxu0 0.0
    %1039 = vmatprep.subr.mxu0 0.0
    %1040 = vmatpush1.msra.mxu0 0.0
    %1041 = vmatprep.subr.mxu0 0.0
    %1042 = vmatpush1.msra.mxu0 0.0
    %1043 = vmatprep.subr.mxu0 0.0
    %1044 = vmatpush1.msra.mxu0 0.0
    %1045 = vmatprep.subr.mxu0 0.0
    %1046 = vmatpush1.msra.mxu0 0.0
    %1047 = vmatprep.subr.mxu0 0.0
    %1048 = vmatpush1.msra.mxu0 0.0
    %1049 = vmatprep.subr.mxu0 0.0
    %1050 = vmatpush1.msra.mxu0 0.0
    %1051 = vmatprep.subr.mxu0 0.0
    %1052 = vmatpush1.msra.mxu0 0.0
    %1053 = vmatprep.subr.mxu0 0.0
    %1054 = vmatpush1.msra.mxu0 0.0
    %1055 = vmatprep.subr.mxu0 0.0
    %1056 = vmatpush1.msra.mxu0 0.0
    %1057 = vmatprep.subr.mxu0 0.0
    %1058 = vmatpush1.msra.mxu0 0.0
    %1059 = vmatprep.subr.mxu0 0.0
    %1060 = vmatpush1.msra.mxu0 0.0
    %1061 = vmatprep.subr.mxu0 0.0
    %1062 = vmatpush1.msra.mxu0 0.0
    %1063 = vmatprep.subr.mxu0 0.0
    %1064 = vmatpush1.msra.mxu0 0.0
    %1065 = vmatprep.subr.mxu0 0.0
    %1066 = vmatpush1.msra.mxu0 0.0
    %1067 = vmatprep.subr.mxu0 0.0
    %1068 = vmatpush1.msra.mxu0 0.0
    %1069 = vmatprep.subr.mxu0 0.0
    %1070 = vmatpush1.msra.mxu0 0.0
    %1071 = vmatprep.subr.mxu0 0.0
    %1072 = vmatpush1.msra.mxu0 0.0
    %1073 = vmatprep.subr.mxu0 0.0
    %1074 = vmatpush1.msra.mxu0 0.0
    %1075 = vmatprep.subr.mxu0 0.0
    %1076 = vmatpush1.msra.mxu0 0.0
    %1077 = vmatprep.subr.mxu0 0.0
    %1078 = vmatpush1.msra.mxu0 0.0
    %1079 = vmatprep.subr.mxu0 0.0
    %1080 = vmatpush1.msra.mxu0 0.0
    %1081 = vmatprep.mubr.f32.mxu0 0.0
    %1082 = vmatmul.mubr.f32.gmra.mrb[0].mxu0 %v1015
    %v1083 = vpop.f32.mrb[0].mxu0
    %v1084 = vadd.f32 0.0, %v1083
    %v1085 = vpop.f32.mrb[0].mxu0
    %1086 = vdwg.mxu0
    %1088 = vrot.lane.b32.xlu0 %v720, 16
    %v1089 = vpop.permute.xlu0 %1088
    %1092 = vrot.lane.b32.xlu0 %v906, 32
    %v1093 = vpop.permute.xlu0 %1092
    %1096 = vrot.lane.b32.xlu0 %v1084, 48
    %v1097 = vpop.permute.xlu0 %1096
    %v1099 = vsel %vm381, %v542, %v1089
    %vm1100 = vcmask 261120
    %v1101 = vsel %vm1100, %v1099, %v1093
    %vm1102 = vcmask 392192
    %v1103 = vsel %vm1102, %v1101, %v1097
    %v1104 = vld [vmem:[#allocation14] sm:$0xff]
    %v1105 = vld [vmem:[#allocation14 + $0x8] sm:$0xff]
    %v1106 = vld [vmem:[#allocation14 + $0x10] sm:$0xff]
    %v1107 = vld [vmem:[#allocation14 + $0x18] sm:$0xff]
    %v1108 = vld [vmem:[#allocation14 + $0x20] sm:$0xff]
    %v1109 = vld [vmem:[#allocation14 + $0x28] sm:$0xff]
    %v1110 = vld [vmem:[#allocation14 + $0x30] sm:$0xff]
    %v1111 = vld [vmem:[#allocation14 + $0x38] sm:$0xff]
    %v1113 = vsel %vm170, %v1103, 0
    %v1116 = vsel %vm170, %v1104, 0
    %v1119 = vsel %vm170, %v1105, 0
    %v1122 = vsel %vm170, %v1106, 0
    %v1125 = vsel %vm170, %v1107, 0
    %v1128 = vsel %vm170, %v1108, 0
    %v1131 = vsel %vm170, %v1109, 0
    %v1134 = vsel %vm170, %v1110, 0
    %v1137 = vsel %vm170, %v1111, 0
    %1139 = vmatprep.subr.mxu0 0.0
    %1140 = vmatpush1.xpose.msra.mxu0 %v1116
    %1141 = vmatprep.subr.mxu0 0.0
    %1142 = vmatpush1.xpose.msra.mxu0 %v1119
    %1143 = vmatprep.subr.mxu0 0.0
    %1144 = vmatpush1.xpose.msra.mxu0 %v1122
    %1145 = vmatprep.subr.mxu0 0.0
    %1146 = vmatpush1.xpose.msra.mxu0 %v1125
    %1147 = vmatprep.subr.mxu0 0.0
    %1148 = vmatpush1.xpose.msra.mxu0 %v1128
    %1149 = vmatprep.subr.mxu0 0.0
    %1150 = vmatpush1.xpose.msra.mxu0 %v1131
    %1151 = vmatprep.subr.mxu0 0.0
    %1152 = vmatpush1.xpose.msra.mxu0 %v1134
    %1153 = vmatprep.subr.mxu0 0.0
    %1154 = vmatpush1.xpose.msra.mxu0 %v1137
    %1155 = vmatprep.subr.mxu0 0.0
    %1156 = vmatpush1.xpose.msra.mxu0 0.0
    %1157 = vmatprep.subr.mxu0 0.0
    %1158 = vmatpush1.xpose.msra.mxu0 0.0
    %1159 = vmatprep.subr.mxu0 0.0
    %1160 = vmatpush1.xpose.msra.mxu0 0.0
    %1161 = vmatprep.subr.mxu0 0.0
    %1162 = vmatpush1.xpose.msra.mxu0 0.0
    %1163 = vmatprep.subr.mxu0 0.0
    %1164 = vmatpush1.xpose.msra.mxu0 0.0
    %1165 = vmatprep.subr.mxu0 0.0
    %1166 = vmatpush1.xpose.msra.mxu0 0.0
    %1167 = vmatprep.subr.mxu0 0.0
    %1168 = vmatpush1.xpose.msra.mxu0 0.0
    %1169 = vmatprep.subr.mxu0 0.0
    %1170 = vmatpush1.xpose.msra.mxu0 0.0
    %1171 = vmatprep.subr.mxu0 0.0
    %1172 = vmatpush1.xpose.msra.mxu0 0.0
    %1173 = vmatprep.subr.mxu0 0.0
    %1174 = vmatpush1.xpose.msra.mxu0 0.0
    %1175 = vmatprep.subr.mxu0 0.0
    %1176 = vmatpush1.xpose.msra.mxu0 0.0
    %1177 = vmatprep.subr.mxu0 0.0
    %1178 = vmatpush1.xpose.msra.mxu0 0.0
    %1179 = vmatprep.subr.mxu0 0.0
    %1180 = vmatpush1.xpose.msra.mxu0 0.0
    %1181 = vmatprep.subr.mxu0 0.0
    %1182 = vmatpush1.xpose.msra.mxu0 0.0
    %1183 = vmatprep.subr.mxu0 0.0
    %1184 = vmatpush1.xpose.msra.mxu0 0.0
    %1185 = vmatprep.subr.mxu0 0.0
    %1186 = vmatpush1.xpose.msra.mxu0 0.0
    %1187 = vmatprep.subr.mxu0 0.0
    %1188 = vmatpush1.xpose.msra.mxu0 0.0
    %1189 = vmatprep.subr.mxu0 0.0
    %1190 = vmatpush1.xpose.msra.mxu0 0.0
    %1191 = vmatprep.subr.mxu0 0.0
    %1192 = vmatpush1.xpose.msra.mxu0 0.0
    %1193 = vmatprep.subr.mxu0 0.0
    %1194 = vmatpush1.xpose.msra.mxu0 0.0
    %1195 = vmatprep.subr.mxu0 0.0
    %1196 = vmatpush1.xpose.msra.mxu0 0.0
    %1197 = vmatprep.subr.mxu0 0.0
    %1198 = vmatpush1.xpose.msra.mxu0 0.0
    %1199 = vmatprep.subr.mxu0 0.0
    %1200 = vmatpush1.xpose.msra.mxu0 0.0
    %1201 = vmatprep.subr.mxu0 0.0
    %1202 = vmatpush1.xpose.msra.mxu0 0.0
    %1203 = vmatprep.mubr.f32.mxu0 0.0
    %1204 = vmatmul.mubr.f32.gmra.mrb[0].mxu0 %v1113
    %v1205 = vpop.f32.mrb[0].mxu0
    %v1206 = vadd.f32 %v167, %v1205
    %v1207 = vpop.f32.mrb[0].mxu0
    %1208 = vdwg.mxu0
    %1209 = vst.msk [vmem:[#allocation20] sm:$0xff] %vm170, %v1206
    %v1210 = vld [vmem:[#allocation11] sm:$0x1]
    %v1211 = vmul.f32 %v1206, %v1206
    %v1212 = vsel %vm170, %v1211, 0.0
    %1213 = vadd.xlane.f32.xlu0 %v1212
    %v1214 = vpop.xlane.xlu0 %1213
    %v1215 = vmul.f32 %v1214, %v174
    %v1216 = vadd.f32 %v1215, 1e-06
    %v1217 = vrsqrt.pop %v1216
    %v1218 = vmul.f32 %v1206, %v1217
    %v1220 = vlaneseq
    %v1221 = vshrl.u32 %v1220, 7
    %v1222 = vsub.s32 0, %v1221
    %v1223 = vrot.slane %v1210, %v1222
    %v1225 = vmul.f32 %v1218, %v1223
    %v1226 = vld [vmem:[#allocation16] sm:$0xff]
    %v1227 = vld [vmem:[#allocation16 + $0x8] sm:$0xff]
    %v1228 = vld [vmem:[#allocation16 + $0x10] sm:$0xff]
    %v1229 = vld [vmem:[#allocation16 + $0x18] sm:$0xff]
    %v1230 = vld [vmem:[#allocation16 + $0x20] sm:$0xff]
    %v1231 = vld [vmem:[#allocation16 + $0x28] sm:$0xff]
    %v1232 = vld [vmem:[#allocation16 + $0x30] sm:$0xff]
    %v1233 = vld [vmem:[#allocation16 + $0x38] sm:$0xff]
    %v1234 = vld [vmem:[#allocation16 + $0x40] sm:$0xff]
    %v1235 = vld [vmem:[#allocation16 + $0x48] sm:$0xff]
    %v1236 = vld [vmem:[#allocation16 + $0x50] sm:$0xff]
    %v1237 = vld [vmem:[#allocation16 + $0x58] sm:$0xff]
    %v1238 = vld [vmem:[#allocation16 + $0x60] sm:$0xff]
    %v1239 = vld [vmem:[#allocation16 + $0x68] sm:$0xff]
    %v1240 = vld [vmem:[#allocation16 + $0x70] sm:$0xff]
    %v1241 = vld [vmem:[#allocation16 + $0x78] sm:$0xff]
    %v1242 = vld [vmem:[#allocation16 + $0x80] sm:$0xff]
    %v1243 = vld [vmem:[#allocation16 + $0x88] sm:$0xff]
    %v1244 = vld [vmem:[#allocation16 + $0x90] sm:$0xff]
    %v1245 = vld [vmem:[#allocation16 + $0x98] sm:$0xff]
    %v1246 = vld [vmem:[#allocation16 + $0xa0] sm:$0xff]
    %v1247 = vld [vmem:[#allocation16 + $0xa8] sm:$0xff]
    %v1248 = vld [vmem:[#allocation16 + $0xb0] sm:$0xff]
    %v1249 = vld [vmem:[#allocation16 + $0xb8] sm:$0xff]
    %v1250 = vld [vmem:[#allocation16 + $0xc0] sm:$0xff]
    %v1251 = vld [vmem:[#allocation16 + $0xc8] sm:$0xff]
    %v1252 = vld [vmem:[#allocation16 + $0xd0] sm:$0xff]
    %v1253 = vld [vmem:[#allocation16 + $0xd8] sm:$0xff]
    %v1254 = vld [vmem:[#allocation16 + $0xe0] sm:$0xff]
    %v1255 = vld [vmem:[#allocation16 + $0xe8] sm:$0xff]
    %v1256 = vld [vmem:[#allocation16 + $0xf0] sm:$0xff]
    %v1257 = vld [vmem:[#allocation16 + $0xf8] sm:$0xff]
    %v1259 = vsel %vm170, %v1225, 0
    %v1262 = vsel %vm170, %v1226, 0
    %v1265 = vsel %vm170, %v1227, 0
    %v1268 = vsel %vm170, %v1228, 0
    %v1271 = vsel %vm170, %v1229, 0
    %v1274 = vsel %vm170, %v1230, 0
    %v1277 = vsel %vm170, %v1231, 0
    %v1280 = vsel %vm170, %v1232, 0
    %v1283 = vsel %vm170, %v1233, 0
    %v1286 = vsel %vm170, %v1234, 0
    %v1289 = vsel %vm170, %v1235, 0
    %v1292 = vsel %vm170, %v1236, 0
    %v1295 = vsel %vm170, %v1237, 0
    %v1298 = vsel %vm170, %v1238, 0
    %v1301 = vsel %vm170, %v1239, 0
    %v1304 = vsel %vm170, %v1240, 0
    %v1307 = vsel %vm170, %v1241, 0
    %v1310 = vsel %vm170, %v1242, 0
    %v1313 = vsel %vm170, %v1243, 0
    %v1316 = vsel %vm170, %v1244, 0
    %v1319 = vsel %vm170, %v1245, 0
    %v1322 = vsel %vm170, %v1246, 0
    %v1325 = vsel %vm170, %v1247, 0
    %v1328 = vsel %vm170, %v1248, 0
    %v1331 = vsel %vm170, %v1249, 0
    %v1334 = vsel %vm170, %v1250, 0
    %v1337 = vsel %vm170, %v1251, 0
    %v1340 = vsel %vm170, %v1252, 0
    %v1343 = vsel %vm170, %v1253, 0
    %v1346 = vsel %vm170, %v1254, 0
    %v1349 = vsel %vm170, %v1255, 0
    %v1352 = vsel %vm170, %v1256, 0
    %v1355 = vsel %vm170, %v1257, 0
    %1357 = vmatprep.subr.mxu0 0.0
    %1358 = vmatpush1.xpose.msra.mxu0 %v1262
    %1359 = vmatprep.subr.mxu0 0.0
    %1360 = vmatpush1.xpose.msra.mxu0 %v1265
    %1361 = vmatprep.subr.mxu0 0.0
    %1362 = vmatpush1.xpose.msra.mxu0 %v1268
    %1363 = vmatprep.subr.mxu0 0.0
    %1364 = vmatpush1.xpose.msra.mxu0 %v1271
    %1365 = vmatprep.subr.mxu0 0.0
    %1366 = vmatpush1.xpose.msra.mxu0 %v1274
    %1367 = vmatprep.subr.mxu0 0.0
    %1368 = vmatpush1.xpose.msra.mxu0 %v1277
    %1369 = vmatprep.subr.mxu0 0.0
    %1370 = vmatpush1.xpose.msra.mxu0 %v1280
    %1371 = vmatprep.subr.mxu0 0.0
    %1372 = vmatpush1.xpose.msra.mxu0 %v1283
    %1373 = vmatprep.subr.mxu0 0.0
    %1374 = vmatpush1.xpose.msra.mxu0 %v1286
    %1375 = vmatprep.subr.mxu0 0.0
    %1376 = vmatpush1.xpose.msra.mxu0 %v1289
    %1377 = vmatprep.subr.mxu0 0.0
    %1378 = vmatpush1.xpose.msra.mxu0 %v1292
    %1379 = vmatprep.subr.mxu0 0.0
    %1380 = vmatpush1.xpose.msra.mxu0 %v1295
    %1381 = vmatprep.subr.mxu0 0.0
    %1382 = vmatpush1.xpose.msra.mxu0 %v1298
    %1383 = vmatprep.subr.mxu0 0.0
    %1384 = vmatpush1.xpose.msra.mxu0 %v1301
    %1385 = vmatprep.subr.mxu0 0.0
    %1386 = vmatpush1.xpose.msra.mxu0 %v1304
    %1387 = vmatprep.subr.mxu0 0.0
    %1388 = vmatpush1.xpose.msra.mxu0 %v1307
    %1389 = vmatprep.subr.mxu0 0.0
    %1390 = vmatpush1.xpose.msra.mxu0 %v1310
    %1391 = vmatprep.subr.mxu0 0.0
    %1392 = vmatpush1.xpose.msra.mxu0 %v1313
    %1393 = vmatprep.subr.mxu0 0.0
    %1394 = vmatpush1.xpose.msra.mxu0 %v1316
    %1395 = vmatprep.subr.mxu0 0.0
    %1396 = vmatpush1.xpose.msra.mxu0 %v1319
    %1397 = vmatprep.subr.mxu0 0.0
    %1398 = vmatpush1.xpose.msra.mxu0 %v1322
    %1399 = vmatprep.subr.mxu0 0.0
    %1400 = vmatpush1.xpose.msra.mxu0 %v1325
    %1401 = vmatprep.subr.mxu0 0.0
    %1402 = vmatpush1.xpose.msra.mxu0 %v1328
    %1403 = vmatprep.subr.mxu0 0.0
    %1404 = vmatpush1.xpose.msra.mxu0 %v1331
    %1405 = vmatprep.subr.mxu0 0.0
    %1406 = vmatpush1.xpose.msra.mxu0 %v1334
    %1407 = vmatprep.subr.mxu0 0.0
    %1408 = vmatpush1.xpose.msra.mxu0 %v1337
    %1409 = vmatprep.subr.mxu0 0.0
    %1410 = vmatpush1.xpose.msra.mxu0 %v1340
    %1411 = vmatprep.subr.mxu0 0.0
    %1412 = vmatpush1.xpose.msra.mxu0 %v1343
    %1413 = vmatprep.subr.mxu0 0.0
    %1414 = vmatpush1.xpose.msra.mxu0 %v1346
    %1415 = vmatprep.subr.mxu0 0.0
    %1416 = vmatpush1.xpose.msra.mxu0 %v1349
    %1417 = vmatprep.subr.mxu0 0.0
    %1418 = vmatpush1.xpose.msra.mxu0 %v1352
    %1419 = vmatprep.subr.mxu0 0.0
    %1420 = vmatpush1.xpose.msra.mxu0 %v1355
    %1421 = vmatprep.mubr.f32.mxu0 0.0
    %1422 = vmatmul.mubr.f32.gmra.mrb[0].mxu0 %v1259
    %v1423 = vpop.f32.mrb[0].mxu0
    %v1424 = vadd.f32 0.0, %v1423
    %v1425 = vpop.f32.mrb[0].mxu0
    %v1426 = vadd.f32 0.0, %v1425
    %1427 = vdwg.mxu0
    %v1428 = vxor.u32 %v1424, 2147483648
    %v1429 = vmul.f32 %v1428, 1.442695
    %v1430 = vpow.pop %v1429
    %v1431 = vadd.f32 %v1430, 1.0
    %v1432 = vrcp.pop %v1431
    %v1433 = vmul.f32 1.0, %v1432
    %v1434 = vmul.f32 %v1424, %v1433
    %v1435 = vmul.f32 %v1434, %v1426
    %v1436 = vld [vmem:[#allocation17] sm:$0xff]
    %v1437 = vld [vmem:[#allocation17 + $0x8] sm:$0xff]
    %v1438 = vld [vmem:[#allocation17 + $0x10] sm:$0xff]
    %v1439 = vld [vmem:[#allocation17 + $0x18] sm:$0xff]
    %v1440 = vld [vmem:[#allocation17 + $0x20] sm:$0xff]
    %v1441 = vld [vmem:[#allocation17 + $0x28] sm:$0xff]
    %v1442 = vld [vmem:[#allocation17 + $0x30] sm:$0xff]
    %v1443 = vld [vmem:[#allocation17 + $0x38] sm:$0xff]
    %1444 = vmatprep.subr.mxu0 0.0
    %1445 = vmatpush1.xpose.msra.mxu0 %v1436
    %1446 = vmatprep.subr.mxu0 0.0
    %1447 = vmatpush1.xpose.msra.mxu0 %v1437
    %1448 = vmatprep.subr.mxu0 0.0
    %1449 = vmatpush1.xpose.msra.mxu0 %v1438
    %1450 = vmatprep.subr.mxu0 0.0
    %1451 = vmatpush1.xpose.msra.mxu0 %v1439
    %1452 = vmatprep.subr.mxu0 0.0
    %1453 = vmatpush1.xpose.msra.mxu0 %v1440
    %1454 = vmatprep.subr.mxu0 0.0
    %1455 = vmatpush1.xpose.msra.mxu0 %v1441
    %1456 = vmatprep.subr.mxu0 0.0
    %1457 = vmatpush1.xpose.msra.mxu0 %v1442
    %1458 = vmatprep.subr.mxu0 0.0
    %1459 = vmatpush1.xpose.msra.mxu0 %v1443
    %1460 = vmatprep.subr.mxu0 0.0
    %1461 = vmatpush1.xpose.msra.mxu0 0.0
    %1462 = vmatprep.subr.mxu0 0.0
    %1463 = vmatpush1.xpose.msra.mxu0 0.0
    %1464 = vmatprep.subr.mxu0 0.0
    %1465 = vmatpush1.xpose.msra.mxu0 0.0
    %1466 = vmatprep.subr.mxu0 0.0
    %1467 = vmatpush1.xpose.msra.mxu0 0.0
    %1468 = vmatprep.subr.mxu0 0.0
    %1469 = vmatpush1.xpose.msra.mxu0 0.0
    %1470 = vmatprep.subr.mxu0 0.0
    %1471 = vmatpush1.xpose.msra.mxu0 0.0
    %1472 = vmatprep.subr.mxu0 0.0
    %1473 = vmatpush1.xpose.msra.mxu0 0.0
    %1474 = vmatprep.subr.mxu0 0.0
    %1475 = vmatpush1.xpose.msra.mxu0 0.0
    %1476 = vmatprep.subr.mxu0 0.0
    %1477 = vmatpush1.xpose.msra.mxu0 0.0
    %1478 = vmatprep.subr.mxu0 0.0
    %1479 = vmatpush1.xpose.msra.mxu0 0.0
    %1480 = vmatprep.subr.mxu0 0.0
    %1481 = vmatpush1.xpose.msra.mxu0 0.0
    %1482 = vmatprep.subr.mxu0 0.0
    %1483 = vmatpush1.xpose.msra.mxu0 0.0
    %1484 = vmatprep.subr.mxu0 0.0
    %1485 = vmatpush1.xpose.msra.mxu0 0.0
    %1486 = vmatprep.subr.mxu0 0.0
    %1487 = vmatpush1.xpose.msra.mxu0 0.0
    %1488 = vmatprep.subr.mxu0 0.0
    %1489 = vmatpush1.xpose.msra.mxu0 0.0
    %1490 = vmatprep.subr.mxu0 0.0
    %1491 = vmatpush1.xpose.msra.mxu0 0.0
    %1492 = vmatprep.subr.mxu0 0.0
    %1493 = vmatpush1.xpose.msra.mxu0 0.0
    %1494 = vmatprep.subr.mxu0 0.0
    %1495 = vmatpush1.xpose.msra.mxu0 0.0
    %1496 = vmatprep.subr.mxu0 0.0
    %1497 = vmatpush1.xpose.msra.mxu0 0.0
    %1498 = vmatprep.subr.mxu0 0.0
    %1499 = vmatpush1.xpose.msra.mxu0 0.0
    %1500 = vmatprep.subr.mxu0 0.0
    %1501 = vmatpush1.xpose.msra.mxu0 0.0
    %1502 = vmatprep.subr.mxu0 0.0
    %1503 = vmatpush1.xpose.msra.mxu0 0.0
    %1504 = vmatprep.subr.mxu0 0.0
    %1505 = vmatpush1.xpose.msra.mxu0 0.0
    %1506 = vmatprep.subr.mxu0 0.0
    %1507 = vmatpush1.xpose.msra.mxu0 0.0
    %1508 = vmatprep.mubr.f32.mxu0 0.0
    %1509 = vmatmul.mubr.f32.gmra.mrb[0].mxu0 %v1435
    %v1510 = vpop.f32.mrb[0].mxu0
    %v1511 = vadd.f32 0.0, %v1510
    %v1512 = vpop.f32.mrb[0].mxu0
    %1513 = vdwg.mxu0
    %1514 = vst.msk [vmem:[#allocation19] sm:$0xff] %vm170, %v1511
    // Predicated region
    $region82: #{tpu_custom_call.1} parent=1 // pred_check
      _
    $region83: #{tpu_custom_call.1} parent=1 // pred_check_branch
      %1516 = sbr.rel (0) target = $region85
    $region84: #{tpu_custom_call.1} parent=1 // pred_region
      %s1518 = ssub.s32 128, 128
      %1519 = vsyncadd [#allocation4], %s1518
      %s1521 = sshll.u32 [#allocation19], 4
      %s1522 = int_to_ptr.vmem [resolvable:$true] %s1521
      %1524 = dma.vmem_to_hbm [thread:$0]  %s1522, 128, %s10, [#allocation4]
    $region85: #{tpu_custom_call.1} parent=1 // pred_fallthru
      _
    // Predicated region
    $region86: #{tpu_custom_call.1} parent=1 // pred_check
      _
    $region87: #{tpu_custom_call.1} parent=1 // pred_check_branch
      %1526 = sbr.rel (0) target = $region89
    $region88: #{tpu_custom_call.1} parent=1 // pred_region
      %s1528 = ssub.s32 128, 128
      %1529 = vsyncadd [#allocation21], %s1528
      %s1531 = sshll.u32 [#allocation20], 4
      %s1532 = int_to_ptr.vmem [resolvable:$true] %s1531
      %1534 = dma.vmem_to_hbm [thread:$0]  %s1532, 128, %s11, [#allocation21]
    $region89: #{tpu_custom_call.1} parent=1 // pred_fallthru
      _
    // Predicated region
    $region90: #{tpu_custom_call.1} parent=1 // pred_check
      _
    $region91: #{tpu_custom_call.1} parent=1 // pred_check_branch
      %1536 = sbr.rel (0) target = $region93
    $region92: #{tpu_custom_call.1} parent=1 // pred_region
      %1537 = dma.done [#allocation4], 128
    $region93: #{tpu_custom_call.1} parent=1 // pred_fallthru
      _
    // Predicated region
    $region94: #{tpu_custom_call.1} parent=1 // pred_check
      _
    $region95: #{tpu_custom_call.1} parent=1 // pred_check_branch
      %1539 = sbr.rel (0) target = $region97
    $region96: #{tpu_custom_call.1} parent=1 // pred_region
      %1540 = dma.done [#allocation21], 128
    $region97: #{tpu_custom_call.1} parent=1 // pred_fallthru
      _
    %1541 = vsyncpa [#allocation3], 1
    %1542 = vsyncpa [#allocation6], 1
    %1543 = vsyncpa [#allocation9], 1
    %1544 = vsyncpa [#allocation12], 1
    %1545 = vsyncpa [#allocation15], 1
    %1546 = vsyncpa [#allocation18], 1
    %1547 = vsyncpa [#allocation4], 1
    %1548 = vsyncpa [#allocation21], 1

</llo_original>
